<compile_context>
chip_gen: v7x
topology: tpu7x:2x2x1
jax: 0.10.0
libtpu: 0.0.40
codegen_flags: <defaults>
</compile_context>

<pallas_src>
import jax
import jax.numpy as jnp
from jax.experimental import pallas as pl
from jax.experimental.pallas import tpu as pltpu


_BATCH_BLOCK = 1024          # examples per grid step (lane-dense (1, 1024) slab)
_VOCAB_CHUNK = 512           # score columns per in-kernel two-hot matmul chunk
_FOLD_BLOCK_ELEMS = 1 << 20  # ~4 MiB f32 per fold input block (v7x-safe)


def _round_up(x, m):
    return ((x + m - 1) // m) * m


# ---------------------------------------------------------------------------
# Kernel 1: fold one half of the Linear weight (plus optional bias) into an
# embedding table, tiled over the vocab axis.
#   tab  : (tile_v, F)  table block (any float dtype; upcast in-kernel)
#   w    : (F, 1) f32   matching half of the Linear weight, as a column
#   bias : (1, 1) f32   scalar in SMEM, added to every folded score
#   s    : (tile_v, 1) f32   s[v, 0] = tab[v, :] . w[:, 0] + bias
def _fold_scores_kernel(tab_ref, w_ref, bias_ref, s_ref):
    s_ref[...] = (
        jnp.dot(tab_ref[...].astype(jnp.float32), w_ref[...],
                preferred_element_type=jnp.float32)
        + bias_ref[0, 0]
    )


def _fold_scores(table, w_half, bias):
    """table: (V, F); w_half: (F,); bias: scalar  ->  (V,) f32 folded scores."""
    V, F = table.shape
    # Keep each input block <= ~4 MiB so 2x double-buffered inputs + output
    # stay well inside the default scoped-VMEM limit on all generations
    # (v7x has only 64 MiB physical VMEM / 32 MiB default scoped).
    max_rows = max(8, (_FOLD_BLOCK_ELEMS // F) // 8 * 8)
    tile_v = V if V <= max_rows else max_rows
    return pl.pallas_call(
        _fold_scores_kernel,
        out_shape=jax.ShapeDtypeStruct((V, 1), jnp.float32),
        grid=(pl.cdiv(V, tile_v),),
        in_specs=[
            pl.BlockSpec((tile_v, F), lambda i: (i, 0)),             # table block
            pl.BlockSpec((F, 1), lambda i: (0, 0)),                  # weight col
            pl.BlockSpec(memory_space=pltpu.MemorySpace.SMEM),       # bias scalar
        ],
        out_specs=pl.BlockSpec((tile_v, 1), lambda i: (i, 0)),
        compiler_params=pltpu.CompilerParams(
            dimension_semantics=("parallel",)),
    )(table,
      w_half.reshape(F, 1).astype(jnp.float32),
      jnp.asarray(bias, jnp.float32).reshape(1, 1))[:, 0]


# ---------------------------------------------------------------------------
# Kernel 2: vectorized two-hot gather + sigmoid over a lane-dense batch slab.
#   s_ref : (1, v_tot_pad) f32  combined folded scores [s_d + b | s_g | 0-pad]
#   d_ref : (1, 1, bt) int32    disease indices
#   g_ref : (1, 1, bt) int32    gene indices, pre-offset by Vd
#   o_ref : (1, 1, bt) f32      sigmoid(s_d[d] + s_g[g] + b)
def _make_gather_kernel(v_tot_pad, v_chunk, bt):
    n_chunks = v_tot_pad // v_chunk

    def chunk_contribution(base, d, g, s_chunk):
        vocab_ids = jax.lax.broadcasted_iota(jnp.int32, (v_chunk, bt), 0) + base
        two_hot = jnp.where(
            jnp.logical_or(vocab_ids == d, vocab_ids == g),
            jnp.float32(1.0), jnp.float32(0.0))
        # (1, v_chunk) @ (v_chunk, bt) -> (1, bt): lane-dense, no relayout.
        return jnp.dot(s_chunk, two_hot, preferred_element_type=jnp.float32)

    def kernel(s_ref, d_ref, g_ref, o_ref):
        d = d_ref[0]                              # (1, bt) int32
        g = g_ref[0]                              # (1, bt) int32 (offset by Vd)
        if n_chunks <= 16:
            # Fully unrolled static chunk loop (the common / tested path).
            acc = jnp.zeros((1, bt), jnp.float32)
            for c in range(n_chunks):
                base = c * v_chunk
                acc = acc + chunk_contribution(
                    base, d, g, s_ref[:, base:base + v_chunk])
        else:
            # Large-vocab fallback: rolled loop with dynamic lane slices.
            def body(c, acc):
                base = pl.multiple_of(c * v_chunk, v_chunk)
                return acc + chunk_contribution(
                    base, d, g, s_ref[:, pl.ds(base, v_chunk)])
            acc = jax.lax.fori_loop(0, n_chunks, body,
                                    jnp.zeros((1, bt), jnp.float32))
        o_ref[...] = jax.nn.sigmoid(acc)[None]
    return kernel


# ---------------------------------------------------------------------------
def recsys_forward(diseases, genes, d_table, g_table, w, b,
                   *, batch_block=_BATCH_BLOCK, vocab_chunk=_VOCAB_CHUNK):
    """diseases/genes: (B,) int; d_table: (Vd, F); g_table: (Vg, F);
    w: (1, 2F) nn.Linear weight; b: (1,) bias.  Returns sigmoid(.) of shape (B,)."""
    B = diseases.shape[0]
    Vd, F = d_table.shape
    Vg = g_table.shape[0]

    # ---- fold the Linear layer into per-vocab score tables (amortizable) ----
    s_d = _fold_scores(d_table, w[0, :F], b[0])     # (Vd,), bias folded in
    s_g = _fold_scores(g_table, w[0, F:], 0.0)      # (Vg,)

    v_tot = Vd + Vg
    v_chunk = min(vocab_chunk, _round_up(v_tot, 128))
    v_tot_pad = _round_up(v_tot, v_chunk)
    s_all = jnp.pad(jnp.concatenate([s_d, s_g]),
                    (0, v_tot_pad - v_tot)).reshape(1, v_tot_pad)

    # Indices: clip once as a vector op (nn.Embedding would raise on OOB; we
    # saturate) and offset genes into the joint score row.
    d_idx = jnp.clip(diseases.astype(jnp.int32), 0, Vd - 1)
    g_idx = jnp.clip(genes.astype(jnp.int32), 0, Vg - 1) + Vd

    # Pad the batch to whole lane-dense slabs; padded lanes are sliced off.
    b_pad = _round_up(max(B, 1), batch_block)
    nblocks = b_pad // batch_block
    d2 = jnp.pad(d_idx, (0, b_pad - B)).reshape(nblocks, 1, batch_block)
    g2 = jnp.pad(g_idx, (0, b_pad - B)).reshape(nblocks, 1, batch_block)

    kernel = _make_gather_kernel(v_tot_pad, v_chunk, batch_block)
    out = pl.pallas_call(
        kernel,
        out_shape=jax.ShapeDtypeStruct((nblocks, 1, batch_block), jnp.float32),
        grid=(nblocks,),
        in_specs=[
            pl.BlockSpec((1, v_tot_pad), lambda i: (0, 0)),            # scores (VMEM)
            pl.BlockSpec((1, 1, batch_block), lambda i: (i, 0, 0)),    # d indices
            pl.BlockSpec((1, 1, batch_block), lambda i: (i, 0, 0)),    # g indices
        ],
        out_specs=pl.BlockSpec((1, 1, batch_block), lambda i: (i, 0, 0)),
        # Batch axis is parallel -> shards across the 2 v7x TensorCores once
        # the batch spans >= 2 slabs; near-neutral on v5e/v6e.
        compiler_params=pltpu.CompilerParams(
            dimension_semantics=("parallel",)),
    )(s_all, d2, g2)

    return out.reshape(b_pad)[:B]   # torch .squeeze() equivalent


# ---------------------------------------------------------------------------
def _reference_forward(diseases, genes, d_table, g_table, w, b):
    d_emb = d_table[diseases]
    g_emb = g_table[genes]
    x = jnp.concatenate([d_emb, g_emb], axis=1)
    return jax.nn.sigmoid(x @ w.T + b)[:, 0]


if __name__ == "__main__":
    # Small, deterministic setup consistent with RecSysModel.__init__.
    n_diseases, n_genes, n_factors = 32, 64, 16
    batch = 8

    key = jax.random.PRNGKey(0)
    k1, k2, k3, k4, k5, k6 = jax.random.split(key, 6)

    # nn.Embedding default init: N(0, 1)
    d_table = jax.random.normal(k1, (n_diseases, n_factors), dtype=jnp.float32)
    g_table = jax.random.normal(k2, (n_genes, n_factors), dtype=jnp.float32)

    # nn.Linear(2F, 1) default init: U(-1/sqrt(2F), 1/sqrt(2F))
    bound = 1.0 / jnp.sqrt(2.0 * n_factors)
    w = jax.random.uniform(k3, (1, 2 * n_factors), minval=-bound, maxval=bound,
                           dtype=jnp.float32)
    b = jax.random.uniform(k4, (1,), minval=-bound, maxval=bound,
                           dtype=jnp.float32)

    diseases = jax.random.randint(k5, (batch,), 0, n_diseases, dtype=jnp.int32)
    genes = jax.random.randint(k6, (batch,), 0, n_genes, dtype=jnp.int32)

    out = jax.jit(recsys_forward)(diseases, genes, d_table, g_table, w, b)
    out = jax.block_until_ready(out)

    ref = _reference_forward(diseases, genes, d_table, g_table, w, b)
    assert out.shape == (batch,), out.shape
    assert jnp.allclose(out, ref, atol=2e-5, rtol=2e-5), (out, ref)

    print("KERNEL_OK")
</pallas_src>

<mosaic_0001>
module attributes {stable_mosaic.version = 11 : i64} {
  func.func @_fold_scores_kernel(%arg0: i32, %arg1: memref<64x16xf32, #tpu.memory_space<vmem>>, %arg2: memref<16x1xf32, #tpu.memory_space<vmem>>, %arg3: memref<1x1xf32, #tpu.memory_space<smem>>, %arg4: memref<64x1xf32, #tpu.memory_space<vmem>>) attributes {dimension_semantics = [#tpu.dimension_semantics<parallel>], iteration_bounds = array<i64: 1>, scalar_prefetch = 0 : i64, scratch_operands = 0 : i64, tpu.core_type = #tpu.core_type<tc>, window_params = [{transform_indices = @transform_0, window_bounds = array<i64: 64, 16>}, {pipeline_mode = #tpu.pipeline_mode<synchronous>, transform_indices = @transform_1, window_bounds = array<i64: 16, 1>}, {transform_indices = @transform_2, window_bounds = array<i64: 1, 1>}, {transform_indices = @transform_3, window_bounds = array<i64: 64, 1>}]} {
    %c0 = arith.constant 0 : index
    %c0_0 = arith.constant 0 : index
    %0 = vector.load %arg1[%c0, %c0_0] : memref<64x16xf32, #tpu.memory_space<vmem>>, vector<64x16xf32>
    %c0_1 = arith.constant 0 : index
    %c0_2 = arith.constant 0 : index
    %1 = vector.load %arg2[%c0_1, %c0_2] : memref<16x1xf32, #tpu.memory_space<vmem>>, vector<16x1xf32>
    %cst = arith.constant dense<0.000000e+00> : vector<64x1xf32>
    %2 = tpu.matmul %0, %1, %cst {dimension_numbers = #tpu.dot_dimension_numbers<[1], [0], [0], [1], [0, 0, 1, 1], [], []>} : vector<64x16xf32>, vector<16x1xf32>, vector<64x1xf32> -> vector<64x1xf32>
    %c0_3 = arith.constant 0 : index
    %c0_4 = arith.constant 0 : index
    %3 = memref.load %arg3[%c0_3, %c0_4] : memref<1x1xf32, #tpu.memory_space<smem>>
    %4 = vector.broadcast %3 : f32 to vector<64x1xf32>
    %5 = arith.addf %2, %4 : vector<64x1xf32>
    %c0_5 = arith.constant 0 : index
    %c0_6 = arith.constant 0 : index
    %6 = vector.load %arg4[%c0_5, %c0_6] : memref<64x1xf32, #tpu.memory_space<vmem>>, vector<64x1xf32>
    tpu.vector_store %arg4[%c0_5, %c0_6], %5 {strides = array<i32>} : memref<64x1xf32, #tpu.memory_space<vmem>>, vector<64x1xf32>,
    return
  }
  func.func @transform_0(%arg0: i32) -> (i32, i32) {
    %c0_i32 = arith.constant 0 : i32
    %c0_i32_0 = arith.constant 0 : i32
    return %arg0, %c0_i32 : i32, i32
  }
  func.func @transform_1(%arg0: i32) -> (i32, i32) {
    %c0_i32 = arith.constant 0 : i32
    %c0_i32_0 = arith.constant 0 : i32
    %c0_i32_1 = arith.constant 0 : i32
    return %c0_i32, %c0_i32_0 : i32, i32
  }
  func.func @transform_2(%arg0: i32) -> (i32, i32) {
    %c0_i32 = arith.constant 0 : i32
    %c0_i32_0 = arith.constant 0 : i32
    %c0_i32_1 = arith.constant 0 : i32
    return %c0_i32, %c0_i32_0 : i32, i32
  }
  func.func @transform_3(%arg0: i32) -> (i32, i32) {
    %c0_i32 = arith.constant 0 : i32
    %c0_i32_0 = arith.constant 0 : i32
    return %arg0, %c0_i32 : i32, i32
  }
}

module attributes {stable_mosaic.version = 11 : i64} {
  func.func @_fold_scores_kernel(%arg0: i32, %arg1: memref<32x16xf32, #tpu.memory_space<vmem>>, %arg2: memref<16x1xf32, #tpu.memory_space<vmem>>, %arg3: memref<1x1xf32, #tpu.memory_space<smem>>, %arg4: memref<32x1xf32, #tpu.memory_space<vmem>>) attributes {dimension_semantics = [#tpu.dimension_semantics<parallel>], iteration_bounds = array<i64: 1>, scalar_prefetch = 0 : i64, scratch_operands = 0 : i64, tpu.core_type = #tpu.core_type<tc>, window_params = [{transform_indices = @transform_0, window_bounds = array<i64: 32, 16>}, {pipeline_mode = #tpu.pipeline_mode<synchronous>, transform_indices = @transform_1, window_bounds = array<i64: 16, 1>}, {transform_indices = @transform_2, window_bounds = array<i64: 1, 1>}, {transform_indices = @transform_3, window_bounds = array<i64: 32, 1>}]} {
    %c0 = arith.constant 0 : index
    %c0_0 = arith.constant 0 : index
    %0 = vector.load %arg1[%c0, %c0_0] : memref<32x16xf32, #tpu.memory_space<vmem>>, vector<32x16xf32>
    %c0_1 = arith.constant 0 : index
    %c0_2 = arith.constant 0 : index
    %1 = vector.load %arg2[%c0_1, %c0_2] : memref<16x1xf32, #tpu.memory_space<vmem>>, vector<16x1xf32>
    %cst = arith.constant dense<0.000000e+00> : vector<32x1xf32>
    %2 = tpu.matmul %0, %1, %cst {dimension_numbers = #tpu.dot_dimension_numbers<[1], [0], [0], [1], [0, 0, 1, 1], [], []>} : vector<32x16xf32>, vector<16x1xf32>, vector<32x1xf32> -> vector<32x1xf32>
    %c0_3 = arith.constant 0 : index
    %c0_4 = arith.constant 0 : index
    %3 = memref.load %arg3[%c0_3, %c0_4] : memref<1x1xf32, #tpu.memory_space<smem>>
    %4 = vector.broadcast %3 : f32 to vector<32x1xf32>
    %5 = arith.addf %2, %4 : vector<32x1xf32>
    %c0_5 = arith.constant 0 : index
    %c0_6 = arith.constant 0 : index
    %6 = vector.load %arg4[%c0_5, %c0_6] : memref<32x1xf32, #tpu.memory_space<vmem>>, vector<32x1xf32>
    tpu.vector_store %arg4[%c0_5, %c0_6], %5 {strides = array<i32>} : memref<32x1xf32, #tpu.memory_space<vmem>>, vector<32x1xf32>,
    return
  }
  func.func @transform_0(%arg0: i32) -> (i32, i32) {
    %c0_i32 = arith.constant 0 : i32
    %c0_i32_0 = arith.constant 0 : i32
    return %arg0, %c0_i32 : i32, i32
  }
  func.func @transform_1(%arg0: i32) -> (i32, i32) {
    %c0_i32 = arith.constant 0 : i32
    %c0_i32_0 = arith.constant 0 : i32
    %c0_i32_1 = arith.constant 0 : i32
    return %c0_i32, %c0_i32_0 : i32, i32
  }
  func.func @transform_2(%arg0: i32) -> (i32, i32) {
    %c0_i32 = arith.constant 0 : i32
    %c0_i32_0 = arith.constant 0 : i32
    %c0_i32_1 = arith.constant 0 : i32
    return %c0_i32, %c0_i32_0 : i32, i32
  }
  func.func @transform_3(%arg0: i32) -> (i32, i32) {
    %c0_i32 = arith.constant 0 : i32
    %c0_i32_0 = arith.constant 0 : i32
    return %arg0, %c0_i32 : i32, i32
  }
}

module attributes {stable_mosaic.version = 11 : i64} {
  func.func @kernel(%arg0: i32, %arg1: memref<1x128xf32, #tpu.memory_space<vmem>>, %arg2: memref<1x1x1024xi32, #tpu.memory_space<vmem>>, %arg3: memref<1x1x1024xi32, #tpu.memory_space<vmem>>, %arg4: memref<1x1x1024xf32, #tpu.memory_space<vmem>>) attributes {dimension_semantics = [#tpu.dimension_semantics<parallel>], iteration_bounds = array<i64: 1>, scalar_prefetch = 0 : i64, scratch_operands = 0 : i64, tpu.core_type = #tpu.core_type<tc>, window_params = [{pipeline_mode = #tpu.pipeline_mode<synchronous>, transform_indices = @transform_0, window_bounds = array<i64: 1, 128>}, {transform_indices = @transform_1, window_bounds = array<i64: 1, 1, 1024>}, {transform_indices = @transform_2, window_bounds = array<i64: 1, 1, 1024>}, {transform_indices = @transform_3, window_bounds = array<i64: 1, 1, 1024>}]} {
    %c0 = arith.constant 0 : index
    %c0_0 = arith.constant 0 : index
    %c0_1 = arith.constant 0 : index
    %0 = vector.load %arg2[%c0, %c0_0, %c0_1] : memref<1x1x1024xi32, #tpu.memory_space<vmem>>, vector<1x1x1024xi32>
    %1 = vector.shape_cast %0 : vector<1x1x1024xi32> to vector<1x1024xi32>
    %c0_2 = arith.constant 0 : index
    %c0_3 = arith.constant 0 : index
    %c0_4 = arith.constant 0 : index
    %2 = vector.load %arg3[%c0_2, %c0_3, %c0_4] : memref<1x1x1024xi32, #tpu.memory_space<vmem>>, vector<1x1x1024xi32>
    %3 = vector.shape_cast %2 : vector<1x1x1024xi32> to vector<1x1024xi32>
    %cst = arith.constant 0.000000e+00 : f32
    %4 = vector.broadcast %cst : f32 to vector<1x1024xf32>
    %c0_5 = arith.constant 0 : index
    %c0_6 = arith.constant 0 : index
    %5 = vector.load %arg1[%c0_5, %c0_6] : memref<1x128xf32, #tpu.memory_space<vmem>>, vector<1x128xf32>
    %6 = tpu.iota {dimensions = array<i32: 0>} : vector<128x1024xi32>
    %c0_i32 = arith.constant 0 : i32
    %7 = vector.broadcast %c0_i32 : i32 to vector<128x1024xi32>
    %8 = arith.addi %6, %7 : vector<128x1024xi32>
    %9 = vector.broadcast %1 : vector<1x1024xi32> to vector<128x1024xi32>
    %10 = arith.cmpi eq, %8, %9 : vector<128x1024xi32>
    %11 = vector.broadcast %3 : vector<1x1024xi32> to vector<128x1024xi32>
    %12 = arith.cmpi eq, %8, %11 : vector<128x1024xi32>
    %13 = arith.ori %10, %12 : vector<128x1024xi1>
    %cst_7 = arith.constant 1.000000e+00 : f32
    %cst_8 = arith.constant 0.000000e+00 : f32
    %14 = vector.broadcast %cst_7 : f32 to vector<128x1024xf32>
    %15 = vector.broadcast %cst_8 : f32 to vector<128x1024xf32>
    %16 = arith.select %13, %14, %15 : vector<128x1024xi1>, vector<128x1024xf32>
    %cst_9 = arith.constant dense<0.000000e+00> : vector<1x1024xf32>
    %17 = tpu.matmul %5, %16, %cst_9 {dimension_numbers = #tpu.dot_dimension_numbers<[1], [0], [0], [1], [0, 0, 1, 1], [], []>} : vector<1x128xf32>, vector<128x1024xf32>, vector<1x1024xf32> -> vector<1x1024xf32>
    %18 = arith.addf %4, %17 : vector<1x1024xf32>
    %19 = arith.negf %18 : vector<1x1024xf32>
    %20 = math.exp %19 : vector<1x1024xf32>
    %cst_10 = arith.constant 1.000000e+00 : f32
    %21 = vector.broadcast %cst_10 : f32 to vector<1x1024xf32>
    %22 = arith.addf %21, %20 : vector<1x1024xf32>
    %23 = arith.divf %21, %22 : vector<1x1024xf32>
    %24 = vector.shape_cast %23 : vector<1x1024xf32> to vector<1x1x1024xf32>
    %c0_11 = arith.constant 0 : index
    %c0_12 = arith.constant 0 : index
    %c0_13 = arith.constant 0 : index
    %25 = vector.load %arg4[%c0_11, %c0_12, %c0_13] : memref<1x1x1024xf32, #tpu.memory_space<vmem>>, vector<1x1x1024xf32>
    tpu.vector_store %arg4[%c0_11, %c0_12, %c0_13], %24 {strides = array<i32>} : memref<1x1x1024xf32, #tpu.memory_space<vmem>>, vector<1x1x1024xf32>,
    return
  }
  func.func @transform_0(%arg0: i32) -> (i32, i32) {
    %c0_i32 = arith.constant 0 : i32
    %c0_i32_0 = arith.constant 0 : i32
    %c0_i32_1 = arith.constant 0 : i32
    return %c0_i32, %c0_i32_0 : i32, i32
  }
  func.func @transform_1(%arg0: i32) -> (i32, i32, i32) {
    %c0_i32 = arith.constant 0 : i32
    %c0_i32_0 = arith.constant 0 : i32
    %c0_i32_1 = arith.constant 0 : i32
    return %arg0, %c0_i32, %c0_i32_0 : i32, i32, i32
  }
  func.func @transform_2(%arg0: i32) -> (i32, i32, i32) {
    %c0_i32 = arith.constant 0 : i32
    %c0_i32_0 = arith.constant 0 : i32
    %c0_i32_1 = arith.constant 0 : i32
    return %arg0, %c0_i32, %c0_i32_0 : i32, i32, i32
  }
  func.func @transform_3(%arg0: i32) -> (i32, i32, i32) {
    %c0_i32 = arith.constant 0 : i32
    %c0_i32_0 = arith.constant 0 : i32
    %c0_i32_1 = arith.constant 0 : i32
    return %arg0, %c0_i32, %c0_i32_0 : i32, i32, i32
  }
}

</mosaic_0001>

<llo_original>
// kernel: recsys_forward.4
$region0: #{recsys_forward.4}
  #allocation0 [shape = 'u32[]', space=smem, size = 0x4, offset = 0x4, fixed_abs, tag = 'smem constant byte address 0x4 - core index']
  #allocation1 [shape = 'u32[144,128]{1,0:T(1,128)}', space=vmem, size = 0x12000, scoped, tag = 'internal scratch']
  #allocation2 [shape = 'f32[1,1]{1,0:T(1,128)S(6)}', space=smem, size = 0x200, scoped, tag = 'scoped memory for recsys_forward.4']
  %s0 = inlined_call_operand.vmem [shape: f32[64,16], index: 0, kind: input, shape index: {}]
  %s1 = inlined_call_operand.vmem [shape: f32[16,1], index: 1, kind: input, shape index: {}]
  %s2 = inlined_call_operand.<no memory space> [shape: f32[1,1], index: 2, kind: input, shape index: {}]
  %s3 = inlined_call_operand.vmem [shape: f32[64,1], index: 3, kind: output, shape index: {}]
  %s4 = sld [smem:[#allocation0]]
  $region22: #{recsys_forward.4} parent=0
    _
  %s6 = ssub.s32 1, %s4
  %s7 = scalar_select 0, %s6, %s4
  %8 = sst [smem:[#allocation2]] %s2
  // Predicated region
  $region2: #{recsys_forward.4} parent=0 // pred_check
    _
  $region3: #{recsys_forward.4} parent=0 // pred_check_branch
    %10 = sbr.rel (0) target = $region5
  $region4: #{recsys_forward.4} parent=0 // pred_region
    _
  $region5: #{recsys_forward.4} parent=0 // pred_fallthru
    _
  // Predicated region
  $region6: #{recsys_forward.4} parent=0 // pred_check
    _
  $region7: #{recsys_forward.4} parent=0 // pred_check_branch
    %12 = sbr.rel (0) target = $region9
  $region8: #{recsys_forward.4} parent=0 // pred_region
    _
  $region9: #{recsys_forward.4} parent=0 // pred_fallthru
    _
  // Predicated region
  $region10: #{recsys_forward.4} parent=0 // pred_check
    _
  $region11: #{recsys_forward.4} parent=0 // pred_check_branch
    %14 = sbr.rel (0) target = $region13
  $region12: #{recsys_forward.4} parent=0 // pred_region
    _
  $region13: #{recsys_forward.4} parent=0 // pred_fallthru
    _
  %v15 = vld [vmem:[%s0] sm:$0xff]
  %v16 = vld [vmem:[%s0 + $0x8] sm:$0xff]
  %v17 = vld [vmem:[%s0 + $0x10] sm:$0xff]
  %v18 = vld [vmem:[%s0 + $0x18] sm:$0xff]
  %v19 = vld [vmem:[%s0 + $0x20] sm:$0xff]
  %v20 = vld [vmem:[%s0 + $0x28] sm:$0xff]
  %v21 = vld [vmem:[%s0 + $0x30] sm:$0xff]
  %v22 = vld [vmem:[%s0 + $0x38] sm:$0xff]
  %v23 = vld [vmem:[%s1] sm:$0xff]
  %v24 = vld [vmem:[%s1 + $0x8] sm:$0xff]
  %s25 = sld [smem:[#allocation2]]
  %v26 = vstv %s25
  %vm27 = vcmask 130048
  %v29 = vsel %vm27, %v15, 0
  %v32 = vsel %vm27, %v16, 0
  %v35 = vsel %vm27, %v17, 0
  %v38 = vsel %vm27, %v18, 0
  %v41 = vsel %vm27, %v19, 0
  %v44 = vsel %vm27, %v20, 0
  %v47 = vsel %vm27, %v21, 0
  %v50 = vsel %vm27, %v22, 0
  %52 = vmatprep.subr.mxu0 0.0
  %53 = vmatpush1.msra.mxu0 %v23
  %54 = vmatprep.subr.mxu0 0.0
  %55 = vmatpush1.msra.mxu0 %v24
  %56 = vmatprep.subr.mxu0 0.0
  %57 = vmatpush1.msra.mxu0 0.0
  %58 = vmatprep.subr.mxu0 0.0
  %59 = vmatpush1.msra.mxu0 0.0
  %60 = vmatprep.subr.mxu0 0.0
  %61 = vmatpush1.msra.mxu0 0.0
  %62 = vmatprep.subr.mxu0 0.0
  %63 = vmatpush1.msra.mxu0 0.0
  %64 = vmatprep.subr.mxu0 0.0
  %65 = vmatpush1.msra.mxu0 0.0
  %66 = vmatprep.subr.mxu0 0.0
  %67 = vmatpush1.msra.mxu0 0.0
  %68 = vmatprep.subr.mxu0 0.0
  %69 = vmatpush1.msra.mxu0 0.0
  %70 = vmatprep.subr.mxu0 0.0
  %71 = vmatpush1.msra.mxu0 0.0
  %72 = vmatprep.subr.mxu0 0.0
  %73 = vmatpush1.msra.mxu0 0.0
  %74 = vmatprep.subr.mxu0 0.0
  %75 = vmatpush1.msra.mxu0 0.0
  %76 = vmatprep.subr.mxu0 0.0
  %77 = vmatpush1.msra.mxu0 0.0
  %78 = vmatprep.subr.mxu0 0.0
  %79 = vmatpush1.msra.mxu0 0.0
  %80 = vmatprep.subr.mxu0 0.0
  %81 = vmatpush1.msra.mxu0 0.0
  %82 = vmatprep.subr.mxu0 0.0
  %83 = vmatpush1.msra.mxu0 0.0
  %84 = vmatprep.subr.mxu0 0.0
  %85 = vmatpush1.msra.mxu0 0.0
  %86 = vmatprep.subr.mxu0 0.0
  %87 = vmatpush1.msra.mxu0 0.0
  %88 = vmatprep.subr.mxu0 0.0
  %89 = vmatpush1.msra.mxu0 0.0
  %90 = vmatprep.subr.mxu0 0.0
  %91 = vmatpush1.msra.mxu0 0.0
  %92 = vmatprep.subr.mxu0 0.0
  %93 = vmatpush1.msra.mxu0 0.0
  %94 = vmatprep.subr.mxu0 0.0
  %95 = vmatpush1.msra.mxu0 0.0
  %96 = vmatprep.subr.mxu0 0.0
  %97 = vmatpush1.msra.mxu0 0.0
  %98 = vmatprep.subr.mxu0 0.0
  %99 = vmatpush1.msra.mxu0 0.0
  %100 = vmatprep.subr.mxu0 0.0
  %101 = vmatpush1.msra.mxu0 0.0
  %102 = vmatprep.subr.mxu0 0.0
  %103 = vmatpush1.msra.mxu0 0.0
  %104 = vmatprep.subr.mxu0 0.0
  %105 = vmatpush1.msra.mxu0 0.0
  %106 = vmatprep.subr.mxu0 0.0
  %107 = vmatpush1.msra.mxu0 0.0
  %108 = vmatprep.subr.mxu0 0.0
  %109 = vmatpush1.msra.mxu0 0.0
  %110 = vmatprep.subr.mxu0 0.0
  %111 = vmatpush1.msra.mxu0 0.0
  %112 = vmatprep.subr.mxu0 0.0
  %113 = vmatpush1.msra.mxu0 0.0
  %114 = vmatprep.subr.mxu0 0.0
  %115 = vmatpush1.msra.mxu0 0.0
  %116 = vmatprep.mubr.f32.mxu0 0.0
  %117 = vmatmul.mubr.f32.gmra.mrb[0].mxu0 %v29
  %v118 = vpop.f32.mrb[0].mxu0
  %v119 = vadd.f32 %v26, %v118
  %v120 = vpop.f32.mrb[0].mxu0
  %121 = vmatprep.mubr.f32.mxu0 0.0
  %122 = vmatmul.mubr.f32.gmra.mrb[0].mxu0 %v32
  %v123 = vpop.f32.mrb[0].mxu0
  %v124 = vadd.f32 %v26, %v123
  %v125 = vpop.f32.mrb[0].mxu0
  %126 = vmatprep.mubr.f32.mxu0 0.0
  %127 = vmatmul.mubr.f32.gmra.mrb[0].mxu0 %v35
  %v128 = vpop.f32.mrb[0].mxu0
  %v129 = vadd.f32 %v26, %v128
  %v130 = vpop.f32.mrb[0].mxu0
  %131 = vmatprep.mubr.f32.mxu0 0.0
  %132 = vmatmul.mubr.f32.gmra.mrb[0].mxu0 %v38
  %v133 = vpop.f32.mrb[0].mxu0
  %v134 = vadd.f32 %v26, %v133
  %v135 = vpop.f32.mrb[0].mxu0
  %136 = vmatprep.mubr.f32.mxu0 0.0
  %137 = vmatmul.mubr.f32.gmra.mrb[0].mxu0 %v41
  %v138 = vpop.f32.mrb[0].mxu0
  %v139 = vadd.f32 %v26, %v138
  %v140 = vpop.f32.mrb[0].mxu0
  %141 = vmatprep.mubr.f32.mxu0 0.0
  %142 = vmatmul.mubr.f32.gmra.mrb[0].mxu0 %v44
  %v143 = vpop.f32.mrb[0].mxu0
  %v144 = vadd.f32 %v26, %v143
  %v145 = vpop.f32.mrb[0].mxu0
  %146 = vmatprep.mubr.f32.mxu0 0.0
  %147 = vmatmul.mubr.f32.gmra.mrb[0].mxu0 %v47
  %v148 = vpop.f32.mrb[0].mxu0
  %v149 = vadd.f32 %v26, %v148
  %v150 = vpop.f32.mrb[0].mxu0
  %151 = vmatprep.mubr.f32.mxu0 0.0
  %152 = vmatmul.mubr.f32.gmra.mrb[0].mxu0 %v50
  %v153 = vpop.f32.mrb[0].mxu0
  %v154 = vadd.f32 %v26, %v153
  %v155 = vpop.f32.mrb[0].mxu0
  %156 = vdwg.mxu0
  %vm157 = vcmask 7168
  %158 = vst.msk [vmem:[%s3] sm:$0xff] %vm157, %v119
  %159 = vst.msk [vmem:[%s3 + $0x8] sm:$0xff] %vm157, %v124
  %160 = vst.msk [vmem:[%s3 + $0x10] sm:$0xff] %vm157, %v129
  %161 = vst.msk [vmem:[%s3 + $0x18] sm:$0xff] %vm157, %v134
  %162 = vst.msk [vmem:[%s3 + $0x20] sm:$0xff] %vm157, %v139
  %163 = vst.msk [vmem:[%s3 + $0x28] sm:$0xff] %vm157, %v144
  %164 = vst.msk [vmem:[%s3 + $0x30] sm:$0xff] %vm157, %v149
  %165 = vst.msk [vmem:[%s3 + $0x38] sm:$0xff] %vm157, %v154
  // Predicated region
  $region14: #{recsys_forward.4} parent=0 // pred_check
    _
  $region15: #{recsys_forward.4} parent=0 // pred_check_branch
    %167 = sbr.rel (0) target = $region17
  $region16: #{recsys_forward.4} parent=0 // pred_region
    _
  $region17: #{recsys_forward.4} parent=0 // pred_fallthru
    _
  // Predicated region
  $region18: #{recsys_forward.4} parent=0 // pred_check
    _
  $region19: #{recsys_forward.4} parent=0 // pred_check_branch
    %169 = sbr.rel (0) target = $region21
  $region20: #{recsys_forward.4} parent=0 // pred_region
    _
  $region21: #{recsys_forward.4} parent=0 // pred_fallthru
    _

// kernel: recsys_forward.3
$region0: #{recsys_forward.3}
  #allocation0 [shape = 'u32[]', space=smem, size = 0x4, offset = 0x4, fixed_abs, tag = 'smem constant byte address 0x4 - core index']
  #allocation1 [shape = 'u32[144,128]{1,0:T(1,128)}', space=vmem, size = 0x12000, scoped, tag = 'internal scratch']
  #allocation2 [shape = 'f32[1,1]{1,0:T(1,128)S(6)}', space=smem, size = 0x200, scoped, tag = 'scoped memory for recsys_forward.3']
  %s0 = inlined_call_operand.vmem [shape: f32[32,16], index: 0, kind: input, shape index: {}]
  %s1 = inlined_call_operand.vmem [shape: f32[16,1], index: 1, kind: input, shape index: {}]
  %s2 = inlined_call_operand.<no memory space> [shape: f32[1,1], index: 2, kind: input, shape index: {}]
  %s3 = inlined_call_operand.vmem [shape: f32[32,1], index: 3, kind: output, shape index: {}]
  %s4 = sld [smem:[#allocation0]]
  $region22: #{recsys_forward.3} parent=0
    _
  %s6 = ssub.s32 1, %s4
  %s7 = scalar_select 0, %s6, %s4
  %8 = sst [smem:[#allocation2]] %s2
  // Predicated region
  $region2: #{recsys_forward.3} parent=0 // pred_check
    _
  $region3: #{recsys_forward.3} parent=0 // pred_check_branch
    %10 = sbr.rel (0) target = $region5
  $region4: #{recsys_forward.3} parent=0 // pred_region
    _
  $region5: #{recsys_forward.3} parent=0 // pred_fallthru
    _
  // Predicated region
  $region6: #{recsys_forward.3} parent=0 // pred_check
    _
  $region7: #{recsys_forward.3} parent=0 // pred_check_branch
    %12 = sbr.rel (0) target = $region9
  $region8: #{recsys_forward.3} parent=0 // pred_region
    _
  $region9: #{recsys_forward.3} parent=0 // pred_fallthru
    _
  // Predicated region
  $region10: #{recsys_forward.3} parent=0 // pred_check
    _
  $region11: #{recsys_forward.3} parent=0 // pred_check_branch
    %14 = sbr.rel (0) target = $region13
  $region12: #{recsys_forward.3} parent=0 // pred_region
    _
  $region13: #{recsys_forward.3} parent=0 // pred_fallthru
    _
  %v15 = vld [vmem:[%s0] sm:$0xff]
  %v16 = vld [vmem:[%s0 + $0x8] sm:$0xff]
  %v17 = vld [vmem:[%s0 + $0x10] sm:$0xff]
  %v18 = vld [vmem:[%s0 + $0x18] sm:$0xff]
  %v19 = vld [vmem:[%s1] sm:$0xff]
  %v20 = vld [vmem:[%s1 + $0x8] sm:$0xff]
  %s21 = sld [smem:[#allocation2]]
  %v22 = vstv %s21
  %vm23 = vcmask 130048
  %v25 = vsel %vm23, %v15, 0
  %v28 = vsel %vm23, %v16, 0
  %v31 = vsel %vm23, %v17, 0
  %v34 = vsel %vm23, %v18, 0
  %36 = vmatprep.subr.mxu0 0.0
  %37 = vmatpush1.msra.mxu0 %v19
  %38 = vmatprep.subr.mxu0 0.0
  %39 = vmatpush1.msra.mxu0 %v20
  %40 = vmatprep.subr.mxu0 0.0
  %41 = vmatpush1.msra.mxu0 0.0
  %42 = vmatprep.subr.mxu0 0.0
  %43 = vmatpush1.msra.mxu0 0.0
  %44 = vmatprep.subr.mxu0 0.0
  %45 = vmatpush1.msra.mxu0 0.0
  %46 = vmatprep.subr.mxu0 0.0
  %47 = vmatpush1.msra.mxu0 0.0
  %48 = vmatprep.subr.mxu0 0.0
  %49 = vmatpush1.msra.mxu0 0.0
  %50 = vmatprep.subr.mxu0 0.0
  %51 = vmatpush1.msra.mxu0 0.0
  %52 = vmatprep.subr.mxu0 0.0
  %53 = vmatpush1.msra.mxu0 0.0
  %54 = vmatprep.subr.mxu0 0.0
  %55 = vmatpush1.msra.mxu0 0.0
  %56 = vmatprep.subr.mxu0 0.0
  %57 = vmatpush1.msra.mxu0 0.0
  %58 = vmatprep.subr.mxu0 0.0
  %59 = vmatpush1.msra.mxu0 0.0
  %60 = vmatprep.subr.mxu0 0.0
  %61 = vmatpush1.msra.mxu0 0.0
  %62 = vmatprep.subr.mxu0 0.0
  %63 = vmatpush1.msra.mxu0 0.0
  %64 = vmatprep.subr.mxu0 0.0
  %65 = vmatpush1.msra.mxu0 0.0
  %66 = vmatprep.subr.mxu0 0.0
  %67 = vmatpush1.msra.mxu0 0.0
  %68 = vmatprep.subr.mxu0 0.0
  %69 = vmatpush1.msra.mxu0 0.0
  %70 = vmatprep.subr.mxu0 0.0
  %71 = vmatpush1.msra.mxu0 0.0
  %72 = vmatprep.subr.mxu0 0.0
  %73 = vmatpush1.msra.mxu0 0.0
  %74 = vmatprep.subr.mxu0 0.0
  %75 = vmatpush1.msra.mxu0 0.0
  %76 = vmatprep.subr.mxu0 0.0
  %77 = vmatpush1.msra.mxu0 0.0
  %78 = vmatprep.subr.mxu0 0.0
  %79 = vmatpush1.msra.mxu0 0.0
  %80 = vmatprep.subr.mxu0 0.0
  %81 = vmatpush1.msra.mxu0 0.0
  %82 = vmatprep.subr.mxu0 0.0
  %83 = vmatpush1.msra.mxu0 0.0
  %84 = vmatprep.subr.mxu0 0.0
  %85 = vmatpush1.msra.mxu0 0.0
  %86 = vmatprep.subr.mxu0 0.0
  %87 = vmatpush1.msra.mxu0 0.0
  %88 = vmatprep.subr.mxu0 0.0
  %89 = vmatpush1.msra.mxu0 0.0
  %90 = vmatprep.subr.mxu0 0.0
  %91 = vmatpush1.msra.mxu0 0.0
  %92 = vmatprep.subr.mxu0 0.0
  %93 = vmatpush1.msra.mxu0 0.0
  %94 = vmatprep.subr.mxu0 0.0
  %95 = vmatpush1.msra.mxu0 0.0
  %96 = vmatprep.subr.mxu0 0.0
  %97 = vmatpush1.msra.mxu0 0.0
  %98 = vmatprep.subr.mxu0 0.0
  %99 = vmatpush1.msra.mxu0 0.0
  %100 = vmatprep.mubr.f32.mxu0 0.0
  %101 = vmatmul.mubr.f32.gmra.mrb[0].mxu0 %v25
  %v102 = vpop.f32.mrb[0].mxu0
  %v103 = vadd.f32 %v22, %v102
  %v104 = vpop.f32.mrb[0].mxu0
  %105 = vmatprep.mubr.f32.mxu0 0.0
  %106 = vmatmul.mubr.f32.gmra.mrb[0].mxu0 %v28
  %v107 = vpop.f32.mrb[0].mxu0
  %v108 = vadd.f32 %v22, %v107
  %v109 = vpop.f32.mrb[0].mxu0
  %110 = vmatprep.mubr.f32.mxu0 0.0
  %111 = vmatmul.mubr.f32.gmra.mrb[0].mxu0 %v31
  %v112 = vpop.f32.mrb[0].mxu0
  %v113 = vadd.f32 %v22, %v112
  %v114 = vpop.f32.mrb[0].mxu0
  %115 = vmatprep.mubr.f32.mxu0 0.0
  %116 = vmatmul.mubr.f32.gmra.mrb[0].mxu0 %v34
  %v117 = vpop.f32.mrb[0].mxu0
  %v118 = vadd.f32 %v22, %v117
  %v119 = vpop.f32.mrb[0].mxu0
  %120 = vdwg.mxu0
  %vm121 = vcmask 7168
  %122 = vst.msk [vmem:[%s3] sm:$0xff] %vm121, %v103
  %123 = vst.msk [vmem:[%s3 + $0x8] sm:$0xff] %vm121, %v108
  %124 = vst.msk [vmem:[%s3 + $0x10] sm:$0xff] %vm121, %v113
  %125 = vst.msk [vmem:[%s3 + $0x18] sm:$0xff] %vm121, %v118
  // Predicated region
  $region14: #{recsys_forward.3} parent=0 // pred_check
    _
  $region15: #{recsys_forward.3} parent=0 // pred_check_branch
    %127 = sbr.rel (0) target = $region17
  $region16: #{recsys_forward.3} parent=0 // pred_region
    _
  $region17: #{recsys_forward.3} parent=0 // pred_fallthru
    _
  // Predicated region
  $region18: #{recsys_forward.3} parent=0 // pred_check
    _
  $region19: #{recsys_forward.3} parent=0 // pred_check_branch
    %129 = sbr.rel (0) target = $region21
  $region20: #{recsys_forward.3} parent=0 // pred_region
    _
  $region21: #{recsys_forward.3} parent=0 // pred_fallthru
    _

// kernel: recsys_forward.5
$region0: #{recsys_forward.5}
  #allocation0 [shape = 'u32[]', space=smem, size = 0x4, offset = 0x4, fixed_abs, tag = 'smem constant byte address 0x4 - core index']
  #allocation1 [shape = 'u32[144,128]{1,0:T(1,128)}', space=vmem, size = 0x12000, scoped, tag = 'internal scratch']
  %s0 = inlined_call_operand.vmem [shape: f32[1,128], index: 0, kind: input, shape index: {}]
  %s1 = inlined_call_operand.vmem [shape: s32[1,1,1024], index: 1, kind: input, shape index: {}]
  %s2 = inlined_call_operand.vmem [shape: s32[1,1,1024], index: 2, kind: input, shape index: {}]
  %s3 = inlined_call_operand.vmem [shape: f32[1,1,1024], index: 3, kind: output, shape index: {}]
  %s4 = sld [smem:[#allocation0]]
  $region22: #{recsys_forward.5} parent=0
    _
  %s6 = ssub.s32 1, %s4
  %s7 = scalar_select 0, %s6, %s4
  // Predicated region
  $region2: #{recsys_forward.5} parent=0 // pred_check
    _
  $region3: #{recsys_forward.5} parent=0 // pred_check_branch
    %9 = sbr.rel (0) target = $region5
  $region4: #{recsys_forward.5} parent=0 // pred_region
    _
  $region5: #{recsys_forward.5} parent=0 // pred_fallthru
    _
  // Predicated region
  $region6: #{recsys_forward.5} parent=0 // pred_check
    _
  $region7: #{recsys_forward.5} parent=0 // pred_check_branch
    %11 = sbr.rel (0) target = $region9
  $region8: #{recsys_forward.5} parent=0 // pred_region
    _
  $region9: #{recsys_forward.5} parent=0 // pred_fallthru
    _
  // Predicated region
  $region10: #{recsys_forward.5} parent=0 // pred_check
    _
  $region11: #{recsys_forward.5} parent=0 // pred_check_branch
    %13 = sbr.rel (0) target = $region13
  $region12: #{recsys_forward.5} parent=0 // pred_region
    _
  $region13: #{recsys_forward.5} parent=0 // pred_fallthru
    _
  %v14 = vld [vmem:[%s1] sm:$0xff]
  %v15 = vld [vmem:[%s2] sm:$0xff]
  %v16 = vld [vmem:[%s0] sm:$0x1]
  %v17 = vlaneseq
  %v18 = vshrl.u32 %v17, 7
  %v19 = vadd.s32 %v18, 8
  %v20 = vadd.s32 %v18, 16
  %v21 = vadd.s32 %v18, 24
  %v22 = vadd.s32 %v18, 32
  %v23 = vadd.s32 %v18, 40
  %v24 = vadd.s32 %v18, 48
  %v25 = vadd.s32 %v18, 56
  %v26 = vadd.s32 %v18, 64
  %v27 = vadd.s32 %v18, 72
  %v28 = vadd.s32 %v18, 80
  %v29 = vadd.s32 %v18, 88
  %v30 = vadd.s32 %v18, 96
  %v31 = vadd.s32 %v18, 104
  %v32 = vadd.s32 %v18, 112
  %v33 = vadd.s32 %v18, 120
  %v34 = vlaneseq
  %v35 = vshrl.u32 %v34, 7
  %v36 = vsub.s32 0, %v35
  %v37 = vrot.slane %v14, %v36
  %v38 = vlaneseq
  %v39 = vshrl.u32 %v38, 7
  %v40 = vsub.s32 1, %v39
  %v41 = vrot.slane %v14, %v40
  %v42 = vlaneseq
  %v43 = vshrl.u32 %v42, 7
  %v44 = vsub.s32 2, %v43
  %v45 = vrot.slane %v14, %v44
  %v46 = vlaneseq
  %v47 = vshrl.u32 %v46, 7
  %v48 = vsub.s32 3, %v47
  %v49 = vrot.slane %v14, %v48
  %v50 = vlaneseq
  %v51 = vshrl.u32 %v50, 7
  %v52 = vsub.s32 4, %v51
  %v53 = vrot.slane %v14, %v52
  %v54 = vlaneseq
  %v55 = vshrl.u32 %v54, 7
  %v56 = vsub.s32 5, %v55
  %v57 = vrot.slane %v14, %v56
  %v58 = vlaneseq
  %v59 = vshrl.u32 %v58, 7
  %v60 = vsub.s32 6, %v59
  %v61 = vrot.slane %v14, %v60
  %v62 = vlaneseq
  %v63 = vshrl.u32 %v62, 7
  %v64 = vsub.s32 7, %v63
  %v65 = vrot.slane %v14, %v64
  %vm66 = vcmp.eq.s32.totalorder %v18, %v37
  %vm67 = vcmp.eq.s32.totalorder %v18, %v41
  %vm68 = vcmp.eq.s32.totalorder %v18, %v45
  %vm69 = vcmp.eq.s32.totalorder %v18, %v49
  %vm70 = vcmp.eq.s32.totalorder %v18, %v53
  %vm71 = vcmp.eq.s32.totalorder %v18, %v57
  %vm72 = vcmp.eq.s32.totalorder %v18, %v61
  %vm73 = vcmp.eq.s32.totalorder %v18, %v65
  %vm74 = vcmp.eq.s32.totalorder %v19, %v37
  %vm75 = vcmp.eq.s32.totalorder %v19, %v41
  %vm76 = vcmp.eq.s32.totalorder %v19, %v45
  %vm77 = vcmp.eq.s32.totalorder %v19, %v49
  %vm78 = vcmp.eq.s32.totalorder %v19, %v53
  %vm79 = vcmp.eq.s32.totalorder %v19, %v57
  %vm80 = vcmp.eq.s32.totalorder %v19, %v61
  %vm81 = vcmp.eq.s32.totalorder %v19, %v65
  %vm82 = vcmp.eq.s32.totalorder %v20, %v37
  %vm83 = vcmp.eq.s32.totalorder %v20, %v41
  %vm84 = vcmp.eq.s32.totalorder %v20, %v45
  %vm85 = vcmp.eq.s32.totalorder %v20, %v49
  %vm86 = vcmp.eq.s32.totalorder %v20, %v53
  %vm87 = vcmp.eq.s32.totalorder %v20, %v57
  %vm88 = vcmp.eq.s32.totalorder %v20, %v61
  %vm89 = vcmp.eq.s32.totalorder %v20, %v65
  %vm90 = vcmp.eq.s32.totalorder %v21, %v37
  %vm91 = vcmp.eq.s32.totalorder %v21, %v41
  %vm92 = vcmp.eq.s32.totalorder %v21, %v45
  %vm93 = vcmp.eq.s32.totalorder %v21, %v49
  %vm94 = vcmp.eq.s32.totalorder %v21, %v53
  %vm95 = vcmp.eq.s32.totalorder %v21, %v57
  %vm96 = vcmp.eq.s32.totalorder %v21, %v61
  %vm97 = vcmp.eq.s32.totalorder %v21, %v65
  %vm98 = vcmp.eq.s32.totalorder %v22, %v37
  %vm99 = vcmp.eq.s32.totalorder %v22, %v41
  %vm100 = vcmp.eq.s32.totalorder %v22, %v45
  %vm101 = vcmp.eq.s32.totalorder %v22, %v49
  %vm102 = vcmp.eq.s32.totalorder %v22, %v53
  %vm103 = vcmp.eq.s32.totalorder %v22, %v57
  %vm104 = vcmp.eq.s32.totalorder %v22, %v61
  %vm105 = vcmp.eq.s32.totalorder %v22, %v65
  %vm106 = vcmp.eq.s32.totalorder %v23, %v37
  %vm107 = vcmp.eq.s32.totalorder %v23, %v41
  %vm108 = vcmp.eq.s32.totalorder %v23, %v45
  %vm109 = vcmp.eq.s32.totalorder %v23, %v49
  %vm110 = vcmp.eq.s32.totalorder %v23, %v53
  %vm111 = vcmp.eq.s32.totalorder %v23, %v57
  %vm112 = vcmp.eq.s32.totalorder %v23, %v61
  %vm113 = vcmp.eq.s32.totalorder %v23, %v65
  %vm114 = vcmp.eq.s32.totalorder %v24, %v37
  %vm115 = vcmp.eq.s32.totalorder %v24, %v41
  %vm116 = vcmp.eq.s32.totalorder %v24, %v45
  %vm117 = vcmp.eq.s32.totalorder %v24, %v49
  %vm118 = vcmp.eq.s32.totalorder %v24, %v53
  %vm119 = vcmp.eq.s32.totalorder %v24, %v57
  %vm120 = vcmp.eq.s32.totalorder %v24, %v61
  %vm121 = vcmp.eq.s32.totalorder %v24, %v65
  %vm122 = vcmp.eq.s32.totalorder %v25, %v37
  %vm123 = vcmp.eq.s32.totalorder %v25, %v41
  %vm124 = vcmp.eq.s32.totalorder %v25, %v45
  %vm125 = vcmp.eq.s32.totalorder %v25, %v49
  %vm126 = vcmp.eq.s32.totalorder %v25, %v53
  %vm127 = vcmp.eq.s32.totalorder %v25, %v57
  %vm128 = vcmp.eq.s32.totalorder %v25, %v61
  %vm129 = vcmp.eq.s32.totalorder %v25, %v65
  %vm130 = vcmp.eq.s32.totalorder %v26, %v37
  %vm131 = vcmp.eq.s32.totalorder %v26, %v41
  %vm132 = vcmp.eq.s32.totalorder %v26, %v45
  %vm133 = vcmp.eq.s32.totalorder %v26, %v49
  %vm134 = vcmp.eq.s32.totalorder %v26, %v53
  %vm135 = vcmp.eq.s32.totalorder %v26, %v57
  %vm136 = vcmp.eq.s32.totalorder %v26, %v61
  %vm137 = vcmp.eq.s32.totalorder %v26, %v65
  %vm138 = vcmp.eq.s32.totalorder %v27, %v37
  %vm139 = vcmp.eq.s32.totalorder %v27, %v41
  %vm140 = vcmp.eq.s32.totalorder %v27, %v45
  %vm141 = vcmp.eq.s32.totalorder %v27, %v49
  %vm142 = vcmp.eq.s32.totalorder %v27, %v53
  %vm143 = vcmp.eq.s32.totalorder %v27, %v57
  %vm144 = vcmp.eq.s32.totalorder %v27, %v61
  %vm145 = vcmp.eq.s32.totalorder %v27, %v65
  %vm146 = vcmp.eq.s32.totalorder %v28, %v37
  %vm147 = vcmp.eq.s32.totalorder %v28, %v41
  %vm148 = vcmp.eq.s32.totalorder %v28, %v45
  %vm149 = vcmp.eq.s32.totalorder %v28, %v49
  %vm150 = vcmp.eq.s32.totalorder %v28, %v53
  %vm151 = vcmp.eq.s32.totalorder %v28, %v57
  %vm152 = vcmp.eq.s32.totalorder %v28, %v61
  %vm153 = vcmp.eq.s32.totalorder %v28, %v65
  %vm154 = vcmp.eq.s32.totalorder %v29, %v37
  %vm155 = vcmp.eq.s32.totalorder %v29, %v41
  %vm156 = vcmp.eq.s32.totalorder %v29, %v45
  %vm157 = vcmp.eq.s32.totalorder %v29, %v49
  %vm158 = vcmp.eq.s32.totalorder %v29, %v53
  %vm159 = vcmp.eq.s32.totalorder %v29, %v57
  %vm160 = vcmp.eq.s32.totalorder %v29, %v61
  %vm161 = vcmp.eq.s32.totalorder %v29, %v65
  %vm162 = vcmp.eq.s32.totalorder %v30, %v37
  %vm163 = vcmp.eq.s32.totalorder %v30, %v41
  %vm164 = vcmp.eq.s32.totalorder %v30, %v45
  %vm165 = vcmp.eq.s32.totalorder %v30, %v49
  %vm166 = vcmp.eq.s32.totalorder %v30, %v53
  %vm167 = vcmp.eq.s32.totalorder %v30, %v57
  %vm168 = vcmp.eq.s32.totalorder %v30, %v61
  %vm169 = vcmp.eq.s32.totalorder %v30, %v65
  %vm170 = vcmp.eq.s32.totalorder %v31, %v37
  %vm171 = vcmp.eq.s32.totalorder %v31, %v41
  %vm172 = vcmp.eq.s32.totalorder %v31, %v45
  %vm173 = vcmp.eq.s32.totalorder %v31, %v49
  %vm174 = vcmp.eq.s32.totalorder %v31, %v53
  %vm175 = vcmp.eq.s32.totalorder %v31, %v57
  %vm176 = vcmp.eq.s32.totalorder %v31, %v61
  %vm177 = vcmp.eq.s32.totalorder %v31, %v65
  %vm178 = vcmp.eq.s32.totalorder %v32, %v37
  %vm179 = vcmp.eq.s32.totalorder %v32, %v41
  %vm180 = vcmp.eq.s32.totalorder %v32, %v45
  %vm181 = vcmp.eq.s32.totalorder %v32, %v49
  %vm182 = vcmp.eq.s32.totalorder %v32, %v53
  %vm183 = vcmp.eq.s32.totalorder %v32, %v57
  %vm184 = vcmp.eq.s32.totalorder %v32, %v61
  %vm185 = vcmp.eq.s32.totalorder %v32, %v65
  %vm186 = vcmp.eq.s32.totalorder %v33, %v37
  %vm187 = vcmp.eq.s32.totalorder %v33, %v41
  %vm188 = vcmp.eq.s32.totalorder %v33, %v45
  %vm189 = vcmp.eq.s32.totalorder %v33, %v49
  %vm190 = vcmp.eq.s32.totalorder %v33, %v53
  %vm191 = vcmp.eq.s32.totalorder %v33, %v57
  %vm192 = vcmp.eq.s32.totalorder %v33, %v61
  %vm193 = vcmp.eq.s32.totalorder %v33, %v65
  %v194 = vlaneseq
  %v195 = vshrl.u32 %v194, 7
  %v196 = vsub.s32 0, %v195
  %v197 = vrot.slane %v15, %v196
  %v198 = vlaneseq
  %v199 = vshrl.u32 %v198, 7
  %v200 = vsub.s32 1, %v199
  %v201 = vrot.slane %v15, %v200
  %v202 = vlaneseq
  %v203 = vshrl.u32 %v202, 7
  %v204 = vsub.s32 2, %v203
  %v205 = vrot.slane %v15, %v204
  %v206 = vlaneseq
  %v207 = vshrl.u32 %v206, 7
  %v208 = vsub.s32 3, %v207
  %v209 = vrot.slane %v15, %v208
  %v210 = vlaneseq
  %v211 = vshrl.u32 %v210, 7
  %v212 = vsub.s32 4, %v211
  %v213 = vrot.slane %v15, %v212
  %v214 = vlaneseq
  %v215 = vshrl.u32 %v214, 7
  %v216 = vsub.s32 5, %v215
  %v217 = vrot.slane %v15, %v216
  %v218 = vlaneseq
  %v219 = vshrl.u32 %v218, 7
  %v220 = vsub.s32 6, %v219
  %v221 = vrot.slane %v15, %v220
  %v222 = vlaneseq
  %v223 = vshrl.u32 %v222, 7
  %v224 = vsub.s32 7, %v223
  %v225 = vrot.slane %v15, %v224
  %vm226 = vcmp.eq.s32.totalorder %v18, %v197
  %vm227 = vcmp.eq.s32.totalorder %v18, %v201
  %vm228 = vcmp.eq.s32.totalorder %v18, %v205
  %vm229 = vcmp.eq.s32.totalorder %v18, %v209
  %vm230 = vcmp.eq.s32.totalorder %v18, %v213
  %vm231 = vcmp.eq.s32.totalorder %v18, %v217
  %vm232 = vcmp.eq.s32.totalorder %v18, %v221
  %vm233 = vcmp.eq.s32.totalorder %v18, %v225
  %vm234 = vcmp.eq.s32.totalorder %v19, %v197
  %vm235 = vcmp.eq.s32.totalorder %v19, %v201
  %vm236 = vcmp.eq.s32.totalorder %v19, %v205
  %vm237 = vcmp.eq.s32.totalorder %v19, %v209
  %vm238 = vcmp.eq.s32.totalorder %v19, %v213
  %vm239 = vcmp.eq.s32.totalorder %v19, %v217
  %vm240 = vcmp.eq.s32.totalorder %v19, %v221
  %vm241 = vcmp.eq.s32.totalorder %v19, %v225
  %vm242 = vcmp.eq.s32.totalorder %v20, %v197
  %vm243 = vcmp.eq.s32.totalorder %v20, %v201
  %vm244 = vcmp.eq.s32.totalorder %v20, %v205
  %vm245 = vcmp.eq.s32.totalorder %v20, %v209
  %vm246 = vcmp.eq.s32.totalorder %v20, %v213
  %vm247 = vcmp.eq.s32.totalorder %v20, %v217
  %vm248 = vcmp.eq.s32.totalorder %v20, %v221
  %vm249 = vcmp.eq.s32.totalorder %v20, %v225
  %vm250 = vcmp.eq.s32.totalorder %v21, %v197
  %vm251 = vcmp.eq.s32.totalorder %v21, %v201
  %vm252 = vcmp.eq.s32.totalorder %v21, %v205
  %vm253 = vcmp.eq.s32.totalorder %v21, %v209
  %vm254 = vcmp.eq.s32.totalorder %v21, %v213
  %vm255 = vcmp.eq.s32.totalorder %v21, %v217
  %vm256 = vcmp.eq.s32.totalorder %v21, %v221
  %vm257 = vcmp.eq.s32.totalorder %v21, %v225
  %vm258 = vcmp.eq.s32.totalorder %v22, %v197
  %vm259 = vcmp.eq.s32.totalorder %v22, %v201
  %vm260 = vcmp.eq.s32.totalorder %v22, %v205
  %vm261 = vcmp.eq.s32.totalorder %v22, %v209
  %vm262 = vcmp.eq.s32.totalorder %v22, %v213
  %vm263 = vcmp.eq.s32.totalorder %v22, %v217
  %vm264 = vcmp.eq.s32.totalorder %v22, %v221
  %vm265 = vcmp.eq.s32.totalorder %v22, %v225
  %vm266 = vcmp.eq.s32.totalorder %v23, %v197
  %vm267 = vcmp.eq.s32.totalorder %v23, %v201
  %vm268 = vcmp.eq.s32.totalorder %v23, %v205
  %vm269 = vcmp.eq.s32.totalorder %v23, %v209
  %vm270 = vcmp.eq.s32.totalorder %v23, %v213
  %vm271 = vcmp.eq.s32.totalorder %v23, %v217
  %vm272 = vcmp.eq.s32.totalorder %v23, %v221
  %vm273 = vcmp.eq.s32.totalorder %v23, %v225
  %vm274 = vcmp.eq.s32.totalorder %v24, %v197
  %vm275 = vcmp.eq.s32.totalorder %v24, %v201
  %vm276 = vcmp.eq.s32.totalorder %v24, %v205
  %vm277 = vcmp.eq.s32.totalorder %v24, %v209
  %vm278 = vcmp.eq.s32.totalorder %v24, %v213
  %vm279 = vcmp.eq.s32.totalorder %v24, %v217
  %vm280 = vcmp.eq.s32.totalorder %v24, %v221
  %vm281 = vcmp.eq.s32.totalorder %v24, %v225
  %vm282 = vcmp.eq.s32.totalorder %v25, %v197
  %vm283 = vcmp.eq.s32.totalorder %v25, %v201
  %vm284 = vcmp.eq.s32.totalorder %v25, %v205
  %vm285 = vcmp.eq.s32.totalorder %v25, %v209
  %vm286 = vcmp.eq.s32.totalorder %v25, %v213
  %vm287 = vcmp.eq.s32.totalorder %v25, %v217
  %vm288 = vcmp.eq.s32.totalorder %v25, %v221
  %vm289 = vcmp.eq.s32.totalorder %v25, %v225
  %vm290 = vcmp.eq.s32.totalorder %v26, %v197
  %vm291 = vcmp.eq.s32.totalorder %v26, %v201
  %vm292 = vcmp.eq.s32.totalorder %v26, %v205
  %vm293 = vcmp.eq.s32.totalorder %v26, %v209
  %vm294 = vcmp.eq.s32.totalorder %v26, %v213
  %vm295 = vcmp.eq.s32.totalorder %v26, %v217
  %vm296 = vcmp.eq.s32.totalorder %v26, %v221
  %vm297 = vcmp.eq.s32.totalorder %v26, %v225
  %vm298 = vcmp.eq.s32.totalorder %v27, %v197
  %vm299 = vcmp.eq.s32.totalorder %v27, %v201
  %vm300 = vcmp.eq.s32.totalorder %v27, %v205
  %vm301 = vcmp.eq.s32.totalorder %v27, %v209
  %vm302 = vcmp.eq.s32.totalorder %v27, %v213
  %vm303 = vcmp.eq.s32.totalorder %v27, %v217
  %vm304 = vcmp.eq.s32.totalorder %v27, %v221
  %vm305 = vcmp.eq.s32.totalorder %v27, %v225
  %vm306 = vcmp.eq.s32.totalorder %v28, %v197
  %vm307 = vcmp.eq.s32.totalorder %v28, %v201
  %vm308 = vcmp.eq.s32.totalorder %v28, %v205
  %vm309 = vcmp.eq.s32.totalorder %v28, %v209
  %vm310 = vcmp.eq.s32.totalorder %v28, %v213
  %vm311 = vcmp.eq.s32.totalorder %v28, %v217
  %vm312 = vcmp.eq.s32.totalorder %v28, %v221
  %vm313 = vcmp.eq.s32.totalorder %v28, %v225
  %vm314 = vcmp.eq.s32.totalorder %v29, %v197
  %vm315 = vcmp.eq.s32.totalorder %v29, %v201
  %vm316 = vcmp.eq.s32.totalorder %v29, %v205
  %vm317 = vcmp.eq.s32.totalorder %v29, %v209
  %vm318 = vcmp.eq.s32.totalorder %v29, %v213
  %vm319 = vcmp.eq.s32.totalorder %v29, %v217
  %vm320 = vcmp.eq.s32.totalorder %v29, %v221
  %vm321 = vcmp.eq.s32.totalorder %v29, %v225
  %vm322 = vcmp.eq.s32.totalorder %v30, %v197
  %vm323 = vcmp.eq.s32.totalorder %v30, %v201
  %vm324 = vcmp.eq.s32.totalorder %v30, %v205
  %vm325 = vcmp.eq.s32.totalorder %v30, %v209
  %vm326 = vcmp.eq.s32.totalorder %v30, %v213
  %vm327 = vcmp.eq.s32.totalorder %v30, %v217
  %vm328 = vcmp.eq.s32.totalorder %v30, %v221
  %vm329 = vcmp.eq.s32.totalorder %v30, %v225
  %vm330 = vcmp.eq.s32.totalorder %v31, %v197
  %vm331 = vcmp.eq.s32.totalorder %v31, %v201
  %vm332 = vcmp.eq.s32.totalorder %v31, %v205
  %vm333 = vcmp.eq.s32.totalorder %v31, %v209
  %vm334 = vcmp.eq.s32.totalorder %v31, %v213
  %vm335 = vcmp.eq.s32.totalorder %v31, %v217
  %vm336 = vcmp.eq.s32.totalorder %v31, %v221
  %vm337 = vcmp.eq.s32.totalorder %v31, %v225
  %vm338 = vcmp.eq.s32.totalorder %v32, %v197
  %vm339 = vcmp.eq.s32.totalorder %v32, %v201
  %vm340 = vcmp.eq.s32.totalorder %v32, %v205
  %vm341 = vcmp.eq.s32.totalorder %v32, %v209
  %vm342 = vcmp.eq.s32.totalorder %v32, %v213
  %vm343 = vcmp.eq.s32.totalorder %v32, %v217
  %vm344 = vcmp.eq.s32.totalorder %v32, %v221
  %vm345 = vcmp.eq.s32.totalorder %v32, %v225
  %vm346 = vcmp.eq.s32.totalorder %v33, %v197
  %vm347 = vcmp.eq.s32.totalorder %v33, %v201
  %vm348 = vcmp.eq.s32.totalorder %v33, %v205
  %vm349 = vcmp.eq.s32.totalorder %v33, %v209
  %vm350 = vcmp.eq.s32.totalorder %v33, %v213
  %vm351 = vcmp.eq.s32.totalorder %v33, %v217
  %vm352 = vcmp.eq.s32.totalorder %v33, %v221
  %vm353 = vcmp.eq.s32.totalorder %v33, %v225
  %vm354 = vmor %vm66, %vm226
  %vm355 = vmor %vm67, %vm227
  %vm356 = vmor %vm68, %vm228
  %vm357 = vmor %vm69, %vm229
  %vm358 = vmor %vm70, %vm230
  %vm359 = vmor %vm71, %vm231
  %vm360 = vmor %vm72, %vm232
  %vm361 = vmor %vm73, %vm233
  %vm362 = vmor %vm74, %vm234
  %vm363 = vmor %vm75, %vm235
  %vm364 = vmor %vm76, %vm236
  %vm365 = vmor %vm77, %vm237
  %vm366 = vmor %vm78, %vm238
  %vm367 = vmor %vm79, %vm239
  %vm368 = vmor %vm80, %vm240
  %vm369 = vmor %vm81, %vm241
  %vm370 = vmor %vm82, %vm242
  %vm371 = vmor %vm83, %vm243
  %vm372 = vmor %vm84, %vm244
  %vm373 = vmor %vm85, %vm245
  %vm374 = vmor %vm86, %vm246
  %vm375 = vmor %vm87, %vm247
  %vm376 = vmor %vm88, %vm248
  %vm377 = vmor %vm89, %vm249
  %vm378 = vmor %vm90, %vm250
  %vm379 = vmor %vm91, %vm251
  %vm380 = vmor %vm92, %vm252
  %vm381 = vmor %vm93, %vm253
  %vm382 = vmor %vm94, %vm254
  %vm383 = vmor %vm95, %vm255
  %vm384 = vmor %vm96, %vm256
  %vm385 = vmor %vm97, %vm257
  %vm386 = vmor %vm98, %vm258
  %vm387 = vmor %vm99, %vm259
  %vm388 = vmor %vm100, %vm260
  %vm389 = vmor %vm101, %vm261
  %vm390 = vmor %vm102, %vm262
  %vm391 = vmor %vm103, %vm263
  %vm392 = vmor %vm104, %vm264
  %vm393 = vmor %vm105, %vm265
  %vm394 = vmor %vm106, %vm266
  %vm395 = vmor %vm107, %vm267
  %vm396 = vmor %vm108, %vm268
  %vm397 = vmor %vm109, %vm269
  %vm398 = vmor %vm110, %vm270
  %vm399 = vmor %vm111, %vm271
  %vm400 = vmor %vm112, %vm272
  %vm401 = vmor %vm113, %vm273
  %vm402 = vmor %vm114, %vm274
  %vm403 = vmor %vm115, %vm275
  %vm404 = vmor %vm116, %vm276
  %vm405 = vmor %vm117, %vm277
  %vm406 = vmor %vm118, %vm278
  %vm407 = vmor %vm119, %vm279
  %vm408 = vmor %vm120, %vm280
  %vm409 = vmor %vm121, %vm281
  %vm410 = vmor %vm122, %vm282
  %vm411 = vmor %vm123, %vm283
  %vm412 = vmor %vm124, %vm284
  %vm413 = vmor %vm125, %vm285
  %vm414 = vmor %vm126, %vm286
  %vm415 = vmor %vm127, %vm287
  %vm416 = vmor %vm128, %vm288
  %vm417 = vmor %vm129, %vm289
  %vm418 = vmor %vm130, %vm290
  %vm419 = vmor %vm131, %vm291
  %vm420 = vmor %vm132, %vm292
  %vm421 = vmor %vm133, %vm293
  %vm422 = vmor %vm134, %vm294
  %vm423 = vmor %vm135, %vm295
  %vm424 = vmor %vm136, %vm296
  %vm425 = vmor %vm137, %vm297
  %vm426 = vmor %vm138, %vm298
  %vm427 = vmor %vm139, %vm299
  %vm428 = vmor %vm140, %vm300
  %vm429 = vmor %vm141, %vm301
  %vm430 = vmor %vm142, %vm302
  %vm431 = vmor %vm143, %vm303
  %vm432 = vmor %vm144, %vm304
  %vm433 = vmor %vm145, %vm305
  %vm434 = vmor %vm146, %vm306
  %vm435 = vmor %vm147, %vm307
  %vm436 = vmor %vm148, %vm308
  %vm437 = vmor %vm149, %vm309
  %vm438 = vmor %vm150, %vm310
  %vm439 = vmor %vm151, %vm311
  %vm440 = vmor %vm152, %vm312
  %vm441 = vmor %vm153, %vm313
  %vm442 = vmor %vm154, %vm314
  %vm443 = vmor %vm155, %vm315
  %vm444 = vmor %vm156, %vm316
  %vm445 = vmor %vm157, %vm317
  %vm446 = vmor %vm158, %vm318
  %vm447 = vmor %vm159, %vm319
  %vm448 = vmor %vm160, %vm320
  %vm449 = vmor %vm161, %vm321
  %vm450 = vmor %vm162, %vm322
  %vm451 = vmor %vm163, %vm323
  %vm452 = vmor %vm164, %vm324
  %vm453 = vmor %vm165, %vm325
  %vm454 = vmor %vm166, %vm326
  %vm455 = vmor %vm167, %vm327
  %vm456 = vmor %vm168, %vm328
  %vm457 = vmor %vm169, %vm329
  %vm458 = vmor %vm170, %vm330
  %vm459 = vmor %vm171, %vm331
  %vm460 = vmor %vm172, %vm332
  %vm461 = vmor %vm173, %vm333
  %vm462 = vmor %vm174, %vm334
  %vm463 = vmor %vm175, %vm335
  %vm464 = vmor %vm176, %vm336
  %vm465 = vmor %vm177, %vm337
  %vm466 = vmor %vm178, %vm338
  %vm467 = vmor %vm179, %vm339
  %vm468 = vmor %vm180, %vm340
  %vm469 = vmor %vm181, %vm341
  %vm470 = vmor %vm182, %vm342
  %vm471 = vmor %vm183, %vm343
  %vm472 = vmor %vm184, %vm344
  %vm473 = vmor %vm185, %vm345
  %vm474 = vmor %vm186, %vm346
  %vm475 = vmor %vm187, %vm347
  %vm476 = vmor %vm188, %vm348
  %vm477 = vmor %vm189, %vm349
  %vm478 = vmor %vm190, %vm350
  %vm479 = vmor %vm191, %vm351
  %vm480 = vmor %vm192, %vm352
  %vm481 = vmor %vm193, %vm353
  %v482 = vsel %vm354, 1.0, 0.0
  %v483 = vsel %vm355, 1.0, 0.0
  %v484 = vsel %vm356, 1.0, 0.0
  %v485 = vsel %vm357, 1.0, 0.0
  %v486 = vsel %vm358, 1.0, 0.0
  %v487 = vsel %vm359, 1.0, 0.0
  %v488 = vsel %vm360, 1.0, 0.0
  %v489 = vsel %vm361, 1.0, 0.0
  %v490 = vsel %vm362, 1.0, 0.0
  %v491 = vsel %vm363, 1.0, 0.0
  %v492 = vsel %vm364, 1.0, 0.0
  %v493 = vsel %vm365, 1.0, 0.0
  %v494 = vsel %vm366, 1.0, 0.0
  %v495 = vsel %vm367, 1.0, 0.0
  %v496 = vsel %vm368, 1.0, 0.0
  %v497 = vsel %vm369, 1.0, 0.0
  %v498 = vsel %vm370, 1.0, 0.0
  %v499 = vsel %vm371, 1.0, 0.0
  %v500 = vsel %vm372, 1.0, 0.0
  %v501 = vsel %vm373, 1.0, 0.0
  %v502 = vsel %vm374, 1.0, 0.0
  %v503 = vsel %vm375, 1.0, 0.0
  %v504 = vsel %vm376, 1.0, 0.0
  %v505 = vsel %vm377, 1.0, 0.0
  %v506 = vsel %vm378, 1.0, 0.0
  %v507 = vsel %vm379, 1.0, 0.0
  %v508 = vsel %vm380, 1.0, 0.0
  %v509 = vsel %vm381, 1.0, 0.0
  %v510 = vsel %vm382, 1.0, 0.0
  %v511 = vsel %vm383, 1.0, 0.0
  %v512 = vsel %vm384, 1.0, 0.0
  %v513 = vsel %vm385, 1.0, 0.0
  %v514 = vsel %vm386, 1.0, 0.0
  %v515 = vsel %vm387, 1.0, 0.0
  %v516 = vsel %vm388, 1.0, 0.0
  %v517 = vsel %vm389, 1.0, 0.0
  %v518 = vsel %vm390, 1.0, 0.0
  %v519 = vsel %vm391, 1.0, 0.0
  %v520 = vsel %vm392, 1.0, 0.0
  %v521 = vsel %vm393, 1.0, 0.0
  %v522 = vsel %vm394, 1.0, 0.0
  %v523 = vsel %vm395, 1.0, 0.0
  %v524 = vsel %vm396, 1.0, 0.0
  %v525 = vsel %vm397, 1.0, 0.0
  %v526 = vsel %vm398, 1.0, 0.0
  %v527 = vsel %vm399, 1.0, 0.0
  %v528 = vsel %vm400, 1.0, 0.0
  %v529 = vsel %vm401, 1.0, 0.0
  %v530 = vsel %vm402, 1.0, 0.0
  %v531 = vsel %vm403, 1.0, 0.0
  %v532 = vsel %vm404, 1.0, 0.0
  %v533 = vsel %vm405, 1.0, 0.0
  %v534 = vsel %vm406, 1.0, 0.0
  %v535 = vsel %vm407, 1.0, 0.0
  %v536 = vsel %vm408, 1.0, 0.0
  %v537 = vsel %vm409, 1.0, 0.0
  %v538 = vsel %vm410, 1.0, 0.0
  %v539 = vsel %vm411, 1.0, 0.0
  %v540 = vsel %vm412, 1.0, 0.0
  %v541 = vsel %vm413, 1.0, 0.0
  %v542 = vsel %vm414, 1.0, 0.0
  %v543 = vsel %vm415, 1.0, 0.0
  %v544 = vsel %vm416, 1.0, 0.0
  %v545 = vsel %vm417, 1.0, 0.0
  %v546 = vsel %vm418, 1.0, 0.0
  %v547 = vsel %vm419, 1.0, 0.0
  %v548 = vsel %vm420, 1.0, 0.0
  %v549 = vsel %vm421, 1.0, 0.0
  %v550 = vsel %vm422, 1.0, 0.0
  %v551 = vsel %vm423, 1.0, 0.0
  %v552 = vsel %vm424, 1.0, 0.0
  %v553 = vsel %vm425, 1.0, 0.0
  %v554 = vsel %vm426, 1.0, 0.0
  %v555 = vsel %vm427, 1.0, 0.0
  %v556 = vsel %vm428, 1.0, 0.0
  %v557 = vsel %vm429, 1.0, 0.0
  %v558 = vsel %vm430, 1.0, 0.0
  %v559 = vsel %vm431, 1.0, 0.0
  %v560 = vsel %vm432, 1.0, 0.0
  %v561 = vsel %vm433, 1.0, 0.0
  %v562 = vsel %vm434, 1.0, 0.0
  %v563 = vsel %vm435, 1.0, 0.0
  %v564 = vsel %vm436, 1.0, 0.0
  %v565 = vsel %vm437, 1.0, 0.0
  %v566 = vsel %vm438, 1.0, 0.0
  %v567 = vsel %vm439, 1.0, 0.0
  %v568 = vsel %vm440, 1.0, 0.0
  %v569 = vsel %vm441, 1.0, 0.0
  %v570 = vsel %vm442, 1.0, 0.0
  %v571 = vsel %vm443, 1.0, 0.0
  %v572 = vsel %vm444, 1.0, 0.0
  %v573 = vsel %vm445, 1.0, 0.0
  %v574 = vsel %vm446, 1.0, 0.0
  %v575 = vsel %vm447, 1.0, 0.0
  %v576 = vsel %vm448, 1.0, 0.0
  %v577 = vsel %vm449, 1.0, 0.0
  %v578 = vsel %vm450, 1.0, 0.0
  %v579 = vsel %vm451, 1.0, 0.0
  %v580 = vsel %vm452, 1.0, 0.0
  %v581 = vsel %vm453, 1.0, 0.0
  %v582 = vsel %vm454, 1.0, 0.0
  %v583 = vsel %vm455, 1.0, 0.0
  %v584 = vsel %vm456, 1.0, 0.0
  %v585 = vsel %vm457, 1.0, 0.0
  %v586 = vsel %vm458, 1.0, 0.0
  %v587 = vsel %vm459, 1.0, 0.0
  %v588 = vsel %vm460, 1.0, 0.0
  %v589 = vsel %vm461, 1.0, 0.0
  %v590 = vsel %vm462, 1.0, 0.0
  %v591 = vsel %vm463, 1.0, 0.0
  %v592 = vsel %vm464, 1.0, 0.0
  %v593 = vsel %vm465, 1.0, 0.0
  %v594 = vsel %vm466, 1.0, 0.0
  %v595 = vsel %vm467, 1.0, 0.0
  %v596 = vsel %vm468, 1.0, 0.0
  %v597 = vsel %vm469, 1.0, 0.0
  %v598 = vsel %vm470, 1.0, 0.0
  %v599 = vsel %vm471, 1.0, 0.0
  %v600 = vsel %vm472, 1.0, 0.0
  %v601 = vsel %vm473, 1.0, 0.0
  %v602 = vsel %vm474, 1.0, 0.0
  %v603 = vsel %vm475, 1.0, 0.0
  %v604 = vsel %vm476, 1.0, 0.0
  %v605 = vsel %vm477, 1.0, 0.0
  %v606 = vsel %vm478, 1.0, 0.0
  %v607 = vsel %vm479, 1.0, 0.0
  %v608 = vsel %vm480, 1.0, 0.0
  %v609 = vsel %vm481, 1.0, 0.0
  %610 = vmatprep.subr.mxu0 %v483
  %611 = vmatpush1.msra.mxu0 %v482
  %612 = vmatprep.subr.mxu0 %v491
  %613 = vmatpush1.msra.mxu0 %v490
  %614 = vmatprep.subr.mxu0 %v499
  %615 = vmatpush1.msra.mxu0 %v498
  %616 = vmatprep.subr.mxu0 %v507
  %617 = vmatpush1.msra.mxu0 %v506
  %618 = vmatprep.subr.mxu0 %v515
  %619 = vmatpush1.msra.mxu0 %v514
  %620 = vmatprep.subr.mxu0 %v523
  %621 = vmatpush1.msra.mxu0 %v522
  %622 = vmatprep.subr.mxu0 %v531
  %623 = vmatpush1.msra.mxu0 %v530
  %624 = vmatprep.subr.mxu0 %v539
  %625 = vmatpush1.msra.mxu0 %v538
  %626 = vmatprep.subr.mxu0 %v547
  %627 = vmatpush1.msra.mxu0 %v546
  %628 = vmatprep.subr.mxu0 %v555
  %629 = vmatpush1.msra.mxu0 %v554
  %630 = vmatprep.subr.mxu0 %v563
  %631 = vmatpush1.msra.mxu0 %v562
  %632 = vmatprep.subr.mxu0 %v571
  %633 = vmatpush1.msra.mxu0 %v570
  %634 = vmatprep.subr.mxu0 %v579
  %635 = vmatpush1.msra.mxu0 %v578
  %636 = vmatprep.subr.mxu0 %v587
  %637 = vmatpush1.msra.mxu0 %v586
  %638 = vmatprep.subr.mxu0 %v595
  %639 = vmatpush1.msra.mxu0 %v594
  %640 = vmatprep.subr.mxu0 %v603
  %641 = vmatpush1.msra.mxu0 %v602
  %642 = vmatprep.subr.mxu0 0.0
  %643 = vmatpush1.msra.mxu0 0.0
  %644 = vmatprep.subr.mxu0 0.0
  %645 = vmatpush1.msra.mxu0 0.0
  %646 = vmatprep.subr.mxu0 0.0
  %647 = vmatpush1.msra.mxu0 0.0
  %648 = vmatprep.subr.mxu0 0.0
  %649 = vmatpush1.msra.mxu0 0.0
  %650 = vmatprep.subr.mxu0 0.0
  %651 = vmatpush1.msra.mxu0 0.0
  %652 = vmatprep.subr.mxu0 0.0
  %653 = vmatpush1.msra.mxu0 0.0
  %654 = vmatprep.subr.mxu0 0.0
  %655 = vmatpush1.msra.mxu0 0.0
  %656 = vmatprep.subr.mxu0 0.0
  %657 = vmatpush1.msra.mxu0 0.0
  %658 = vmatprep.subr.mxu0 0.0
  %659 = vmatpush1.msra.mxu0 0.0
  %660 = vmatprep.subr.mxu0 0.0
  %661 = vmatpush1.msra.mxu0 0.0
  %662 = vmatprep.subr.mxu0 0.0
  %663 = vmatpush1.msra.mxu0 0.0
  %664 = vmatprep.subr.mxu0 0.0
  %665 = vmatpush1.msra.mxu0 0.0
  %666 = vmatprep.subr.mxu0 0.0
  %667 = vmatpush1.msra.mxu0 0.0
  %668 = vmatprep.subr.mxu0 0.0
  %669 = vmatpush1.msra.mxu0 0.0
  %670 = vmatprep.subr.mxu0 0.0
  %671 = vmatpush1.msra.mxu0 0.0
  %672 = vmatprep.subr.mxu0 0.0
  %673 = vmatpush1.msra.mxu0 0.0
  %674 = vmatprep.mubr.f32.mxu0 0.0
  %675 = vmatmul.mubr.f32.gmra.mrb[0].mxu0 %v16
  %v676 = vpop.f32.mrb[0].mxu0
  %v677 = vadd.f32 0.0, %v676
  %v678 = vpop.f32.mrb[0].mxu0
  %v679 = vadd.f32 0.0, %v678
  %680 = vdwg.mxu0
  %681 = vmatprep.subr.mxu0 %v485
  %682 = vmatpush1.msra.mxu0 %v484
  %683 = vmatprep.subr.mxu0 %v493
  %684 = vmatpush1.msra.mxu0 %v492
  %685 = vmatprep.subr.mxu0 %v501
  %686 = vmatpush1.msra.mxu0 %v500
  %687 = vmatprep.subr.mxu0 %v509
  %688 = vmatpush1.msra.mxu0 %v508
  %689 = vmatprep.subr.mxu0 %v517
  %690 = vmatpush1.msra.mxu0 %v516
  %691 = vmatprep.subr.mxu0 %v525
  %692 = vmatpush1.msra.mxu0 %v524
  %693 = vmatprep.subr.mxu0 %v533
  %694 = vmatpush1.msra.mxu0 %v532
  %695 = vmatprep.subr.mxu0 %v541
  %696 = vmatpush1.msra.mxu0 %v540
  %697 = vmatprep.subr.mxu0 %v549
  %698 = vmatpush1.msra.mxu0 %v548
  %699 = vmatprep.subr.mxu0 %v557
  %700 = vmatpush1.msra.mxu0 %v556
  %701 = vmatprep.subr.mxu0 %v565
  %702 = vmatpush1.msra.mxu0 %v564
  %703 = vmatprep.subr.mxu0 %v573
  %704 = vmatpush1.msra.mxu0 %v572
  %705 = vmatprep.subr.mxu0 %v581
  %706 = vmatpush1.msra.mxu0 %v580
  %707 = vmatprep.subr.mxu0 %v589
  %708 = vmatpush1.msra.mxu0 %v588
  %709 = vmatprep.subr.mxu0 %v597
  %710 = vmatpush1.msra.mxu0 %v596
  %711 = vmatprep.subr.mxu0 %v605
  %712 = vmatpush1.msra.mxu0 %v604
  %713 = vmatprep.subr.mxu0 0.0
  %714 = vmatpush1.msra.mxu0 0.0
  %715 = vmatprep.subr.mxu0 0.0
  %716 = vmatpush1.msra.mxu0 0.0
  %717 = vmatprep.subr.mxu0 0.0
  %718 = vmatpush1.msra.mxu0 0.0
  %719 = vmatprep.subr.mxu0 0.0
  %720 = vmatpush1.msra.mxu0 0.0
  %721 = vmatprep.subr.mxu0 0.0
  %722 = vmatpush1.msra.mxu0 0.0
  %723 = vmatprep.subr.mxu0 0.0
  %724 = vmatpush1.msra.mxu0 0.0
  %725 = vmatprep.subr.mxu0 0.0
  %726 = vmatpush1.msra.mxu0 0.0
  %727 = vmatprep.subr.mxu0 0.0
  %728 = vmatpush1.msra.mxu0 0.0
  %729 = vmatprep.subr.mxu0 0.0
  %730 = vmatpush1.msra.mxu0 0.0
  %731 = vmatprep.subr.mxu0 0.0
  %732 = vmatpush1.msra.mxu0 0.0
  %733 = vmatprep.subr.mxu0 0.0
  %734 = vmatpush1.msra.mxu0 0.0
  %735 = vmatprep.subr.mxu0 0.0
  %736 = vmatpush1.msra.mxu0 0.0
  %737 = vmatprep.subr.mxu0 0.0
  %738 = vmatpush1.msra.mxu0 0.0
  %739 = vmatprep.subr.mxu0 0.0
  %740 = vmatpush1.msra.mxu0 0.0
  %741 = vmatprep.subr.mxu0 0.0
  %742 = vmatpush1.msra.mxu0 0.0
  %743 = vmatprep.subr.mxu0 0.0
  %744 = vmatpush1.msra.mxu0 0.0
  %745 = vmatprep.mubr.f32.mxu0 0.0
  %746 = vmatmul.mubr.f32.gmra.mrb[0].mxu0 %v16
  %v747 = vpop.f32.mrb[0].mxu0
  %v748 = vadd.f32 0.0, %v747
  %v749 = vpop.f32.mrb[0].mxu0
  %v750 = vadd.f32 0.0, %v749
  %751 = vdwg.mxu0
  %752 = vmatprep.subr.mxu0 %v487
  %753 = vmatpush1.msra.mxu0 %v486
  %754 = vmatprep.subr.mxu0 %v495
  %755 = vmatpush1.msra.mxu0 %v494
  %756 = vmatprep.subr.mxu0 %v503
  %757 = vmatpush1.msra.mxu0 %v502
  %758 = vmatprep.subr.mxu0 %v511
  %759 = vmatpush1.msra.mxu0 %v510
  %760 = vmatprep.subr.mxu0 %v519
  %761 = vmatpush1.msra.mxu0 %v518
  %762 = vmatprep.subr.mxu0 %v527
  %763 = vmatpush1.msra.mxu0 %v526
  %764 = vmatprep.subr.mxu0 %v535
  %765 = vmatpush1.msra.mxu0 %v534
  %766 = vmatprep.subr.mxu0 %v543
  %767 = vmatpush1.msra.mxu0 %v542
  %768 = vmatprep.subr.mxu0 %v551
  %769 = vmatpush1.msra.mxu0 %v550
  %770 = vmatprep.subr.mxu0 %v559
  %771 = vmatpush1.msra.mxu0 %v558
  %772 = vmatprep.subr.mxu0 %v567
  %773 = vmatpush1.msra.mxu0 %v566
  %774 = vmatprep.subr.mxu0 %v575
  %775 = vmatpush1.msra.mxu0 %v574
  %776 = vmatprep.subr.mxu0 %v583
  %777 = vmatpush1.msra.mxu0 %v582
  %778 = vmatprep.subr.mxu0 %v591
  %779 = vmatpush1.msra.mxu0 %v590
  %780 = vmatprep.subr.mxu0 %v599
  %781 = vmatpush1.msra.mxu0 %v598
  %782 = vmatprep.subr.mxu0 %v607
  %783 = vmatpush1.msra.mxu0 %v606
  %784 = vmatprep.subr.mxu0 0.0
  %785 = vmatpush1.msra.mxu0 0.0
  %786 = vmatprep.subr.mxu0 0.0
  %787 = vmatpush1.msra.mxu0 0.0
  %788 = vmatprep.subr.mxu0 0.0
  %789 = vmatpush1.msra.mxu0 0.0
  %790 = vmatprep.subr.mxu0 0.0
  %791 = vmatpush1.msra.mxu0 0.0
  %792 = vmatprep.subr.mxu0 0.0
  %793 = vmatpush1.msra.mxu0 0.0
  %794 = vmatprep.subr.mxu0 0.0
  %795 = vmatpush1.msra.mxu0 0.0
  %796 = vmatprep.subr.mxu0 0.0
  %797 = vmatpush1.msra.mxu0 0.0
  %798 = vmatprep.subr.mxu0 0.0
  %799 = vmatpush1.msra.mxu0 0.0
  %800 = vmatprep.subr.mxu0 0.0
  %801 = vmatpush1.msra.mxu0 0.0
  %802 = vmatprep.subr.mxu0 0.0
  %803 = vmatpush1.msra.mxu0 0.0
  %804 = vmatprep.subr.mxu0 0.0
  %805 = vmatpush1.msra.mxu0 0.0
  %806 = vmatprep.subr.mxu0 0.0
  %807 = vmatpush1.msra.mxu0 0.0
  %808 = vmatprep.subr.mxu0 0.0
  %809 = vmatpush1.msra.mxu0 0.0
  %810 = vmatprep.subr.mxu0 0.0
  %811 = vmatpush1.msra.mxu0 0.0
  %812 = vmatprep.subr.mxu0 0.0
  %813 = vmatpush1.msra.mxu0 0.0
  %814 = vmatprep.subr.mxu0 0.0
  %815 = vmatpush1.msra.mxu0 0.0
  %816 = vmatprep.mubr.f32.mxu0 0.0
  %817 = vmatmul.mubr.f32.gmra.mrb[0].mxu0 %v16
  %v818 = vpop.f32.mrb[0].mxu0
  %v819 = vadd.f32 0.0, %v818
  %v820 = vpop.f32.mrb[0].mxu0
  %v821 = vadd.f32 0.0, %v820
  %822 = vdwg.mxu0
  %823 = vmatprep.subr.mxu0 %v489
  %824 = vmatpush1.msra.mxu0 %v488
  %825 = vmatprep.subr.mxu0 %v497
  %826 = vmatpush1.msra.mxu0 %v496
  %827 = vmatprep.subr.mxu0 %v505
  %828 = vmatpush1.msra.mxu0 %v504
  %829 = vmatprep.subr.mxu0 %v513
  %830 = vmatpush1.msra.mxu0 %v512
  %831 = vmatprep.subr.mxu0 %v521
  %832 = vmatpush1.msra.mxu0 %v520
  %833 = vmatprep.subr.mxu0 %v529
  %834 = vmatpush1.msra.mxu0 %v528
  %835 = vmatprep.subr.mxu0 %v537
  %836 = vmatpush1.msra.mxu0 %v536
  %837 = vmatprep.subr.mxu0 %v545
  %838 = vmatpush1.msra.mxu0 %v544
  %839 = vmatprep.subr.mxu0 %v553
  %840 = vmatpush1.msra.mxu0 %v552
  %841 = vmatprep.subr.mxu0 %v561
  %842 = vmatpush1.msra.mxu0 %v560
  %843 = vmatprep.subr.mxu0 %v569
  %844 = vmatpush1.msra.mxu0 %v568
  %845 = vmatprep.subr.mxu0 %v577
  %846 = vmatpush1.msra.mxu0 %v576
  %847 = vmatprep.subr.mxu0 %v585
  %848 = vmatpush1.msra.mxu0 %v584
  %849 = vmatprep.subr.mxu0 %v593
  %850 = vmatpush1.msra.mxu0 %v592
  %851 = vmatprep.subr.mxu0 %v601
  %852 = vmatpush1.msra.mxu0 %v600
  %853 = vmatprep.subr.mxu0 %v609
  %854 = vmatpush1.msra.mxu0 %v608
  %855 = vmatprep.subr.mxu0 0.0
  %856 = vmatpush1.msra.mxu0 0.0
  %857 = vmatprep.subr.mxu0 0.0
  %858 = vmatpush1.msra.mxu0 0.0
  %859 = vmatprep.subr.mxu0 0.0
  %860 = vmatpush1.msra.mxu0 0.0
  %861 = vmatprep.subr.mxu0 0.0
  %862 = vmatpush1.msra.mxu0 0.0
  %863 = vmatprep.subr.mxu0 0.0
  %864 = vmatpush1.msra.mxu0 0.0
  %865 = vmatprep.subr.mxu0 0.0
  %866 = vmatpush1.msra.mxu0 0.0
  %867 = vmatprep.subr.mxu0 0.0
  %868 = vmatpush1.msra.mxu0 0.0
  %869 = vmatprep.subr.mxu0 0.0
  %870 = vmatpush1.msra.mxu0 0.0
  %871 = vmatprep.subr.mxu0 0.0
  %872 = vmatpush1.msra.mxu0 0.0
  %873 = vmatprep.subr.mxu0 0.0
  %874 = vmatpush1.msra.mxu0 0.0
  %875 = vmatprep.subr.mxu0 0.0
  %876 = vmatpush1.msra.mxu0 0.0
  %877 = vmatprep.subr.mxu0 0.0
  %878 = vmatpush1.msra.mxu0 0.0
  %879 = vmatprep.subr.mxu0 0.0
  %880 = vmatpush1.msra.mxu0 0.0
  %881 = vmatprep.subr.mxu0 0.0
  %882 = vmatpush1.msra.mxu0 0.0
  %883 = vmatprep.subr.mxu0 0.0
  %884 = vmatpush1.msra.mxu0 0.0
  %885 = vmatprep.subr.mxu0 0.0
  %886 = vmatpush1.msra.mxu0 0.0
  %887 = vmatprep.mubr.f32.mxu0 0.0
  %888 = vmatmul.mubr.f32.gmra.mrb[0].mxu0 %v16
  %v889 = vpop.f32.mrb[0].mxu0
  %v890 = vadd.f32 0.0, %v889
  %v891 = vpop.f32.mrb[0].mxu0
  %v892 = vadd.f32 0.0, %v891
  %893 = vdwg.mxu0
  %v894 = vxor.u32 %v677, 2147483648
  %v895 = vxor.u32 %v679, 2147483648
  %v896 = vxor.u32 %v748, 2147483648
  %v897 = vxor.u32 %v750, 2147483648
  %v898 = vxor.u32 %v819, 2147483648
  %v899 = vxor.u32 %v821, 2147483648
  %v900 = vxor.u32 %v890, 2147483648
  %v901 = vxor.u32 %v892, 2147483648
  %v902 = vmul.f32 %v894, 1.442695
  %v903 = vpow.pop %v902
  %v904 = vmul.f32 %v895, 1.442695
  %v905 = vpow.pop %v904
  %v906 = vmul.f32 %v896, 1.442695
  %v907 = vpow.pop %v906
  %v908 = vmul.f32 %v897, 1.442695
  %v909 = vpow.pop %v908
  %v910 = vmul.f32 %v898, 1.442695
  %v911 = vpow.pop %v910
  %v912 = vmul.f32 %v899, 1.442695
  %v913 = vpow.pop %v912
  %v914 = vmul.f32 %v900, 1.442695
  %v915 = vpow.pop %v914
  %v916 = vmul.f32 %v901, 1.442695
  %v917 = vpow.pop %v916
  %v918 = vadd.f32 %v903, 1.0
  %v919 = vadd.f32 %v905, 1.0
  %v920 = vadd.f32 %v907, 1.0
  %v921 = vadd.f32 %v909, 1.0
  %v922 = vadd.f32 %v911, 1.0
  %v923 = vadd.f32 %v913, 1.0
  %v924 = vadd.f32 %v915, 1.0
  %v925 = vadd.f32 %v917, 1.0
  %v926 = vrcp.pop %v918
  %v927 = vmul.f32 1.0, %v926
  %v928 = vrcp.pop %v919
  %v929 = vmul.f32 1.0, %v928
  %v930 = vrcp.pop %v920
  %v931 = vmul.f32 1.0, %v930
  %v932 = vrcp.pop %v921
  %v933 = vmul.f32 1.0, %v932
  %v934 = vrcp.pop %v922
  %v935 = vmul.f32 1.0, %v934
  %v936 = vrcp.pop %v923
  %v937 = vmul.f32 1.0, %v936
  %v938 = vrcp.pop %v924
  %v939 = vmul.f32 1.0, %v938
  %v940 = vrcp.pop %v925
  %v941 = vmul.f32 1.0, %v940
  %v950 = vcombine.low %v927, %v929
  %v951 = vcombine.low %v931, %v933
  %v952 = vcombine.low %v935, %v937
  %v953 = vcombine.low %v939, %v941
  %v955 = vunpack.c.l.s4 1966171168
  %v956 = vunpack.c.0.s8 %v955
  %v957 = vlaneseq
  %v958 = vshrl.u32 %v957, 7
  %v959 = vsub.s32 %v956, %v958
  %v960 = vrot.slane %v950, %v959
  %v962 = vunpack.c.l.s4 1966171168
  %v963 = vunpack.c.0.s8 %v962
  %v964 = vlaneseq
  %v965 = vshrl.u32 %v964, 7
  %v966 = vsub.s32 %v963, %v965
  %v967 = vrot.slane %v951, %v966
  %v969 = vunpack.c.l.s4 1966171168
  %v970 = vunpack.c.0.s8 %v969
  %v971 = vlaneseq
  %v972 = vshrl.u32 %v971, 7
  %v973 = vsub.s32 %v970, %v972
  %v974 = vrot.slane %v952, %v973
  %v976 = vunpack.c.l.s4 1966171168
  %v977 = vunpack.c.0.s8 %v976
  %v978 = vlaneseq
  %v979 = vshrl.u32 %v978, 7
  %v980 = vsub.s32 %v977, %v979
  %v981 = vrot.slane %v953, %v980
  %v982 = vcombine.low %v960, %v967
  %v983 = vcombine.low %v974, %v981
  %v985 = vunpack.c.l.s4 1966171168
  %v986 = vunpack.c.0.s8 %v985
  %v987 = vlaneseq
  %v988 = vshrl.u32 %v987, 7
  %v989 = vsub.s32 %v986, %v988
  %v990 = vrot.slane %v982, %v989
  %v992 = vunpack.c.l.s4 1966171168
  %v993 = vunpack.c.0.s8 %v992
  %v994 = vlaneseq
  %v995 = vshrl.u32 %v994, 7
  %v996 = vsub.s32 %v993, %v995
  %v997 = vrot.slane %v983, %v996
  %v998 = vcombine.low %v990, %v997
  %1000 = vst [vmem:[%s3] sm:$0xff] %v998
  // Predicated region
  $region14: #{recsys_forward.5} parent=0 // pred_check
    _
  $region15: #{recsys_forward.5} parent=0 // pred_check_branch
    %1002 = sbr.rel (0) target = $region17
  $region16: #{recsys_forward.5} parent=0 // pred_region
    _
  $region17: #{recsys_forward.5} parent=0 // pred_fallthru
    _
  // Predicated region
  $region18: #{recsys_forward.5} parent=0 // pred_check
    _
  $region19: #{recsys_forward.5} parent=0 // pred_check_branch
    %1004 = sbr.rel (0) target = $region21
  $region20: #{recsys_forward.5} parent=0 // pred_region
    _
  $region21: #{recsys_forward.5} parent=0 // pred_fallthru
    _

</llo_original>
